<compile_context>
chip_gen: v7x
topology: tpu7x:2x2x1
jax: 0.10.0
libtpu: 0.0.40
codegen_flags: <defaults>
</compile_context>

<pallas_src>
import functools

import jax
import jax.numpy as jnp
from jax import lax
from jax.experimental import pallas as pl
from jax.experimental.pallas import tpu as pltpu


# ----------------------------------------------------------------------------
# Kernel A: fused VarianceAdaptor core
#   3x [ conv1d(K) -> ReLU -> LN -> conv1d(K, pad=1) -> ReLU -> LN -> Linear ]
#   + 2x [ bucketize -> embedding lookup -> residual add ]
# ----------------------------------------------------------------------------
def _fused_adaptor_kernel(K, pad1, pad2, n_bins, p_control,
                          lens_ref,
                          x_ref, w1s_ref, v1s_ref, w2s_ref, v2s_ref, bls_ref,
                          pbins_ref, ebins_ref, pemb_ref, eemb_ref,
                          xo_ref, pred_ref,
                          pad_buf):
    b = pl.program_id(0)
    seq_len = lens_ref[b]                          # scalar in SMEM (scalar prefetch)

    x = x_ref[0]                                   # (T, H) f32
    T = x.shape[0]

    # padding masks synthesized from an iota (no mask tensor DMA)
    pad_col = lax.broadcasted_iota(jnp.int32, (T, 1), 0) >= seq_len   # (T, 1)
    pad_row = lax.broadcasted_iota(jnp.int32, (1, T), 1) >= seq_len   # (1, T)

    def conv_stack(inp, pad):
        # (T, C) -> (T, K*C): K time-shifted taps with zero padding in time,
        # built as static slices of a zero-padded VMEM scratch.
        C = inp.shape[1]
        pad_buf[...] = jnp.zeros(pad_buf.shape, pad_buf.dtype)
        pad_buf[pl.ds(pad, T), pl.ds(0, C)] = inp
        taps = [pad_buf[pl.ds(k, T), pl.ds(0, C)] for k in range(K)]
        return jnp.concatenate(taps, axis=-1)

    def layer_norm(h, g_row, b_row):
        mu = jnp.mean(h, axis=-1, keepdims=True)
        var = jnp.mean((h - mu) ** 2, axis=-1, keepdims=True)
        return (h - mu) * lax.rsqrt(var + 1e-5) * g_row + b_row

    def predictor(p, inp):
        w1 = w1s_ref[p]                            # (K*Cin, F) bf16  (fused taps)
        v1 = v1s_ref[p]                            # (4, F) f32: [b1, g1, be1, wl]
        w2 = w2s_ref[p]                            # (K*F, F)  bf16  (fused taps)
        v2 = v2s_ref[p]                            # (3, F) f32: [b2, g2, be2]
        bl = bls_ref[p]                            # (1, 1) f32

        h = jnp.dot(conv_stack(inp, pad1).astype(jnp.bfloat16), w1,
                    preferred_element_type=jnp.float32) + v1[0:1, :]
        h = jnp.maximum(h, 0.0)
        h = layer_norm(h, v1[1:2, :], v1[2:3, :])
        # dropout == identity at inference
        h = jnp.dot(conv_stack(h, pad2).astype(jnp.bfloat16), w2,
                    preferred_element_type=jnp.float32) + v2[0:1, :]
        h = jnp.maximum(h, 0.0)
        h = layer_norm(h, v2[1:2, :], v2[2:3, :])

        wl = v1[3:4, :]                            # (1, F)
        # column form (time on sublanes) feeds the bucketize/embedding path
        pred_col = jnp.sum(h * wl, axis=-1, keepdims=True) + bl              # (T, 1)
        # row form (time on lanes) gives the lane-dense prediction output
        pred_row = lax.dot_general(wl, h, (((1,), (1,)), ((), ())),
                                   preferred_element_type=jnp.float32) + bl  # (1, T)
        return (jnp.where(pad_col, 0.0, pred_col),
                jnp.where(pad_row, 0.0, pred_row))

    def bucket_embed(pred_col, bins_ref, table_ref):
        # torch.bucketize(v, bins) (right=False): index = #(bins < v)
        bins = bins_ref[...]                                                  # (1, n_bins-1)
        bucket = jnp.sum((pred_col > bins).astype(jnp.int32),
                         axis=-1, keepdims=True)                              # (T, 1)
        onehot = (bucket == lax.broadcasted_iota(jnp.int32, (T, n_bins), 1)
                  ).astype(jnp.float32)                                       # (T, n_bins)
        return jnp.dot(onehot, table_ref[...],
                       preferred_element_type=jnp.float32)                    # (T, H)

    # duration predictor runs on the original x
    _, log_dur_row = predictor(0, x)

    # pitch (phoneme level, target=None -> prediction * p_control)
    pitch_col, pitch_row = predictor(1, x)
    pitch_col = pitch_col * p_control
    pitch_row = pitch_row * p_control
    x = x + bucket_embed(pitch_col, pbins_ref, pemb_ref)

    # NOTE: the reference passes p_control (not e_control) to the energy path;
    # replicated exactly.
    energy_col, energy_row = predictor(2, x)
    energy_col = energy_col * p_control
    energy_row = energy_row * p_control
    x = x + bucket_embed(energy_col, ebins_ref, eemb_ref)

    xo_ref[0] = x
    pred_ref[0:1, :] = log_dur_row
    pred_ref[1:2, :] = pitch_row
    pred_ref[2:3, :] = energy_row


def variance_adaptor_forward(x, src_mask, params,
                             p_control=1.0, e_control=1.0, d_control=1.0):
    """Inference forward of VarianceAdaptor (phoneme-level pitch & energy)."""
    B, T, H = x.shape
    K = params["kernel_size"]
    Fs = params["filter_size"]
    n_bins = params["pitch_emb"].shape[0]
    nb1 = n_bins - 1
    pad1 = (K - 1) // 2
    pad2 = 1  # reference hardcodes padding=1 for conv2
    # TODO(synk): pad2=1 only matches the reference conv2 for kernel_size == 3.

    # src_mask is contiguous end-padding (get_mask_from_lengths); keep only the
    # lengths in SMEM and rebuild the mask in-kernel from an iota.
    src_lens = jnp.sum(jnp.logical_not(src_mask), axis=1).astype(jnp.int32)

    kernel = functools.partial(_fused_adaptor_kernel, K, pad1, pad2, n_bins,
                               float(p_control))
    x_out, preds = pl.pallas_call(
        kernel,
        out_shape=(jax.ShapeDtypeStruct((B, T, H), jnp.float32),
                   jax.ShapeDtypeStruct((B, 3, T), jnp.float32)),
        grid_spec=pltpu.PrefetchScalarGridSpec(
            num_scalar_prefetch=1,                 # src_lens -> SMEM
            grid=(B,),
            in_specs=[
                pl.BlockSpec((1, T, H), lambda b, lens: (b, 0, 0)),        # x
                pl.BlockSpec((3, K * H, Fs), lambda b, lens: (0, 0, 0)),   # w1s (bf16)
                pl.BlockSpec((3, 4, Fs), lambda b, lens: (0, 0, 0)),       # [b1,g1,be1,wl]
                pl.BlockSpec((3, K * Fs, Fs), lambda b, lens: (0, 0, 0)),  # w2s (bf16)
                pl.BlockSpec((3, 3, Fs), lambda b, lens: (0, 0, 0)),       # [b2,g2,be2]
                pl.BlockSpec((3, 1, 1), lambda b, lens: (0, 0, 0)),        # linear biases
                pl.BlockSpec((1, nb1), lambda b, lens: (0, 0)),            # pitch bins
                pl.BlockSpec((1, nb1), lambda b, lens: (0, 0)),            # energy bins
                pl.BlockSpec((n_bins, H), lambda b, lens: (0, 0)),         # pitch emb
                pl.BlockSpec((n_bins, H), lambda b, lens: (0, 0)),         # energy emb
            ],
            out_specs=[
                pl.BlockSpec((1, T, H), lambda b, lens: (b, 0, 0)),        # adapted x
                pl.BlockSpec((None, 3, T), lambda b, lens: (b, 0, 0)),     # lane-dense preds
            ],
            scratch_shapes=[pltpu.VMEM((T + K - 1, max(H, Fs)), jnp.float32)],
        ),
        compiler_params=pltpu.CompilerParams(dimension_semantics=("parallel",)),
    )(src_lens, x,
      params["w1s"], params["v1s"], params["w2s"], params["v2s"], params["bls"],
      params["pitch_bins"], params["energy_bins"],
      params["pitch_emb"], params["energy_emb"])

    log_duration_prediction = preds[:, 0, :]
    pitch_prediction = preds[:, 1, :]
    energy_prediction = preds[:, 2, :]
    duration_rounded = jnp.maximum(
        jnp.round(jnp.exp(log_duration_prediction) - 1.0) * d_control, 0.0)
    return (x_out, pitch_prediction, energy_prediction,
            log_duration_prediction, duration_rounded)


# ----------------------------------------------------------------------------
# Kernel B: LengthRegulator
#   frame t copies phoneme j iff cum[j-1] <= t < cum[j]; output tiled over frames
# ----------------------------------------------------------------------------
def _length_reg_kernel(tile_l, x_ref, start_ref, end_ref, out_ref):
    x = x_ref[0]                                   # (T, H)
    start = start_ref[0]                           # (1, T) int32 exclusive prefix sum
    end = end_ref[0]                               # (1, T) int32 inclusive prefix sum
    frame = (lax.broadcasted_iota(jnp.int32, (tile_l, 1), 0)
             + pl.program_id(1) * tile_l)          # (tile_l, 1) global frame index
    sel = jnp.logical_and(frame >= start, frame < end).astype(x.dtype)   # (tile_l, T)
    # f32 selection matmul == exact row copy (matches torch expand); frames past
    # the total duration select nothing -> zero rows (matches reference padding).
    out_ref[0] = jnp.dot(sel, x, preferred_element_type=jnp.float32).astype(out_ref.dtype)


def length_regulate(x, duration, max_len, tile_l=128):
    B, T, H = x.shape
    # reference expand() truncates each (non-negative) duration via int()
    dur_i = jnp.floor(duration).astype(jnp.int32)                  # (B, T)
    end = jnp.cumsum(dur_i, axis=-1)                               # inclusive prefix sum
    start = end - dur_i
    n_tiles = pl.cdiv(max_len, tile_l)
    l_pad = n_tiles * tile_l
    out = pl.pallas_call(
        functools.partial(_length_reg_kernel, tile_l),
        out_shape=jax.ShapeDtypeStruct((B, l_pad, H), x.dtype),
        grid_spec=pltpu.PrefetchScalarGridSpec(
            num_scalar_prefetch=0,
            grid=(B, n_tiles),
            in_specs=[
                pl.BlockSpec((1, T, H), lambda b, l: (b, 0, 0)),
                pl.BlockSpec((1, 1, T), lambda b, l: (b, 0, 0)),
                pl.BlockSpec((1, 1, T), lambda b, l: (b, 0, 0)),
            ],
            out_specs=pl.BlockSpec((1, tile_l, H), lambda b, l: (b, l, 0)),
        ),
        compiler_params=pltpu.CompilerParams(
            dimension_semantics=("parallel", "parallel")),
    )(x, start[:, None, :], end[:, None, :])
    return out[:, :max_len, :]


# ----------------------------------------------------------------------------
# Parameter construction (deterministic, synthetic)
# ----------------------------------------------------------------------------
def xavier_uniform(key, shape_kio, gain=1.0):
    K, cin, cout = shape_kio
    fan_in, fan_out = cin * K, cout * K
    limit = gain * (6.0 / (fan_in + fan_out)) ** 0.5
    return jax.random.uniform(key, shape_kio, jnp.float32, -limit, limit)


def make_predictor_params(key, H, Fs, K):
    ks = jax.random.split(key, 4)
    bound = 1.0 / (Fs ** 0.5)
    return dict(
        w1=xavier_uniform(ks[0], (K, H, Fs)),
        b1=jnp.zeros((1, Fs), jnp.float32),
        g1=jnp.ones((1, Fs), jnp.float32),
        be1=jnp.zeros((1, Fs), jnp.float32),
        w2=xavier_uniform(ks[1], (K, Fs, Fs)),
        b2=jnp.zeros((1, Fs), jnp.float32),
        g2=jnp.ones((1, Fs), jnp.float32),
        be2=jnp.zeros((1, Fs), jnp.float32),
        wl=jax.random.uniform(ks[2], (1, Fs), jnp.float32, -bound, bound),
        bl=jax.random.uniform(ks[3], (1, 1), jnp.float32, -bound, bound),
    )


def pack_adaptor_params(pred_params, pitch_bins, energy_bins,
                        pitch_emb, energy_emb, H, Fs, K):
    """Stack [duration, pitch, energy] predictor params; fuse conv taps; bf16 weights."""
    w1s = jnp.stack([p["w1"].reshape(K * H, Fs) for p in pred_params]
                    ).astype(jnp.bfloat16)                        # (3, K*H, F)
    w2s = jnp.stack([p["w2"].reshape(K * Fs, Fs) for p in pred_params]
                    ).astype(jnp.bfloat16)                        # (3, K*F, F)
    v1s = jnp.stack([jnp.concatenate([p["b1"], p["g1"], p["be1"], p["wl"]], axis=0)
                     for p in pred_params])                       # (3, 4, F)
    v2s = jnp.stack([jnp.concatenate([p["b2"], p["g2"], p["be2"]], axis=0)
                     for p in pred_params])                       # (3, 3, F)
    bls = jnp.stack([p["bl"] for p in pred_params])               # (3, 1, 1)
    return dict(kernel_size=K, filter_size=Fs,
                w1s=w1s, w2s=w2s, v1s=v1s, v2s=v2s, bls=bls,
                pitch_bins=pitch_bins, energy_bins=energy_bins,
                pitch_emb=pitch_emb, energy_emb=energy_emb)


if __name__ == "__main__":
    # small config: encoder_hidden=32, filter_size=32, kernel_size=3, n_bins=16
    B, T, H = 2, 8, 32
    Fs, K, N_BINS = 32, 3, 16

    root = jax.random.PRNGKey(0)
    k_x, k_d, k_p, k_e, k_pe, k_ee = jax.random.split(root, 6)

    x = jax.random.normal(k_x, (B, T, H), jnp.float32)
    lengths = jnp.array([8, 6], jnp.int32)
    src_mask = jnp.arange(T)[None, :] >= lengths[:, None]          # True == padding

    pred_params = [make_predictor_params(k, H, Fs, K) for k in (k_d, k_p, k_e)]
    params = pack_adaptor_params(
        pred_params,
        # "linear" quantization bins with synthetic stats (replaces stats.json)
        pitch_bins=jnp.linspace(-2.0, 8.0, N_BINS - 1)[None, :].astype(jnp.float32),
        energy_bins=jnp.linspace(-1.5, 8.0, N_BINS - 1)[None, :].astype(jnp.float32),
        pitch_emb=jax.random.normal(k_pe, (N_BINS, H), jnp.float32),
        energy_emb=jax.random.normal(k_ee, (N_BINS, H), jnp.float32),
        H=H, Fs=Fs, K=K)

    (x_adapted, pitch_pred, energy_pred,
     log_dur_pred, dur_rounded) = variance_adaptor_forward(x, src_mask, params)

    mel_len = jnp.sum(jnp.floor(dur_rounded).astype(jnp.int32), axis=1)
    # TODO(synk): max_len is data-dependent; Pallas needs static shapes, so one
    # scalar device_get resolves it here (production: use a static T*max_dur bound).
    max_len = max(int(jax.device_get(jnp.max(mel_len))), 1)

    mel_out = length_regulate(x_adapted, dur_rounded, max_len)
    mel_mask = jnp.arange(max_len)[None, :] >= mel_len[:, None]    # get_mask_from_lengths

    for t in (mel_out, pitch_pred, energy_pred, log_dur_pred,
              dur_rounded, mel_len, mel_mask):
        jax.block_until_ready(t)

    print("KERNEL_OK")
</pallas_src>

<mosaic_0001>
module attributes {stable_mosaic.version = 11 : i64} {
  func.func @_fused_adaptor_kernel(%arg0: i32, %arg1: memref<2xi32, #tpu.memory_space<smem>>, %arg2: memref<1x8x32xf32, #tpu.memory_space<vmem>>, %arg3: memref<3x96x32xbf16, #tpu.memory_space<vmem>>, %arg4: memref<3x4x32xf32, #tpu.memory_space<vmem>>, %arg5: memref<3x96x32xbf16, #tpu.memory_space<vmem>>, %arg6: memref<3x3x32xf32, #tpu.memory_space<vmem>>, %arg7: memref<3x1x1xf32, #tpu.memory_space<vmem>>, %arg8: memref<1x15xf32, #tpu.memory_space<vmem>>, %arg9: memref<1x15xf32, #tpu.memory_space<vmem>>, %arg10: memref<16x32xf32, #tpu.memory_space<vmem>>, %arg11: memref<16x32xf32, #tpu.memory_space<vmem>>, %arg12: memref<1x8x32xf32, #tpu.memory_space<vmem>>, %arg13: memref<1x3x8xf32, #tpu.memory_space<vmem>>, %arg14: memref<10x32xf32, #tpu.memory_space<vmem>>) attributes {dimension_semantics = [#tpu.dimension_semantics<parallel>], iteration_bounds = array<i64: 2>, scalar_prefetch = 1 : i64, scratch_operands = 1 : i64, tpu.core_type = #tpu.core_type<tc>, window_params = [{transform_indices = @transform_0, window_bounds = array<i64: 1, 8, 32>}, {pipeline_mode = #tpu.pipeline_mode<synchronous>, transform_indices = @transform_1, window_bounds = array<i64: 3, 96, 32>}, {pipeline_mode = #tpu.pipeline_mode<synchronous>, transform_indices = @transform_2, window_bounds = array<i64: 3, 4, 32>}, {pipeline_mode = #tpu.pipeline_mode<synchronous>, transform_indices = @transform_3, window_bounds = array<i64: 3, 96, 32>}, {pipeline_mode = #tpu.pipeline_mode<synchronous>, transform_indices = @transform_4, window_bounds = array<i64: 3, 3, 32>}, {pipeline_mode = #tpu.pipeline_mode<synchronous>, transform_indices = @transform_5, window_bounds = array<i64: 3, 1, 1>}, {pipeline_mode = #tpu.pipeline_mode<synchronous>, transform_indices = @transform_6, window_bounds = array<i64: 1, 15>}, {pipeline_mode = #tpu.pipeline_mode<synchronous>, transform_indices = @transform_7, window_bounds = array<i64: 1, 15>}, {pipeline_mode = #tpu.pipeline_mode<synchronous>, transform_indices = @transform_8, window_bounds = array<i64: 16, 32>}, {pipeline_mode = #tpu.pipeline_mode<synchronous>, transform_indices = @transform_9, window_bounds = array<i64: 16, 32>}, {transform_indices = @transform_10, window_bounds = array<i64: 1, 8, 32>}, {transform_indices = @transform_11, window_bounds = array<i64: 1, 3, 8>}]} {
    %0 = arith.index_cast %arg0 : i32 to index
    %1 = memref.load %arg1[%0] : memref<2xi32, #tpu.memory_space<smem>>
    %c0 = arith.constant 0 : index
    %c0_0 = arith.constant 0 : index
    %c0_1 = arith.constant 0 : index
    %2 = vector.load %arg2[%c0, %c0_0, %c0_1] : memref<1x8x32xf32, #tpu.memory_space<vmem>>, vector<1x8x32xf32>
    %3 = vector.shape_cast %2 : vector<1x8x32xf32> to vector<8x32xf32>
    %4 = tpu.iota {dimensions = array<i32: 0>} : vector<8x1xi32>
    %5 = vector.broadcast %1 : i32 to vector<8x1xi32>
    %6 = arith.cmpi sge, %4, %5 : vector<8x1xi32>
    %7 = tpu.iota {dimensions = array<i32: 1>} : vector<1x8xi32>
    %8 = vector.broadcast %1 : i32 to vector<1x8xi32>
    %9 = arith.cmpi sge, %7, %8 : vector<1x8xi32>
    %c0_2 = arith.constant 0 : index
    %c0_3 = arith.constant 0 : index
    %c0_4 = arith.constant 0 : index
    %10 = vector.load %arg3[%c0_2, %c0_3, %c0_4] : memref<3x96x32xbf16, #tpu.memory_space<vmem>>, vector<1x96x32xbf16>
    %11 = vector.shape_cast %10 : vector<1x96x32xbf16> to vector<96x32xbf16>
    %c0_5 = arith.constant 0 : index
    %c0_6 = arith.constant 0 : index
    %c0_7 = arith.constant 0 : index
    %12 = vector.load %arg4[%c0_5, %c0_6, %c0_7] : memref<3x4x32xf32, #tpu.memory_space<vmem>>, vector<1x4x32xf32>
    %13 = vector.shape_cast %12 : vector<1x4x32xf32> to vector<4x32xf32>
    %c0_8 = arith.constant 0 : index
    %c0_9 = arith.constant 0 : index
    %c0_10 = arith.constant 0 : index
    %14 = vector.load %arg5[%c0_8, %c0_9, %c0_10] : memref<3x96x32xbf16, #tpu.memory_space<vmem>>, vector<1x96x32xbf16>
    %15 = vector.shape_cast %14 : vector<1x96x32xbf16> to vector<96x32xbf16>
    %c0_11 = arith.constant 0 : index
    %c0_12 = arith.constant 0 : index
    %c0_13 = arith.constant 0 : index
    %16 = vector.load %arg6[%c0_11, %c0_12, %c0_13] : memref<3x3x32xf32, #tpu.memory_space<vmem>>, vector<1x3x32xf32>
    %17 = vector.shape_cast %16 : vector<1x3x32xf32> to vector<3x32xf32>
    %c0_14 = arith.constant 0 : index
    %c0_15 = arith.constant 0 : index
    %c0_16 = arith.constant 0 : index
    %18 = vector.load %arg7[%c0_14, %c0_15, %c0_16] : memref<3x1x1xf32, #tpu.memory_space<vmem>>, vector<1x1x1xf32>
    %19 = vector.shape_cast %18 : vector<1x1x1xf32> to vector<1x1xf32>
    %cst = arith.constant 0.000000e+00 : f32
    %20 = vector.broadcast %cst : f32 to vector<10x32xf32>
    %c0_17 = arith.constant 0 : index
    %c0_18 = arith.constant 0 : index
    %21 = vector.load %arg14[%c0_17, %c0_18] : memref<10x32xf32, #tpu.memory_space<vmem>>, vector<10x32xf32>
    tpu.vector_store %arg14[%c0_17, %c0_18], %20 {strides = array<i32>} : memref<10x32xf32, #tpu.memory_space<vmem>>, vector<10x32xf32>,
    %c1 = arith.constant 1 : index
    %c0_19 = arith.constant 0 : index
    %22 = vector.load %arg14[%c1, %c0_19] : memref<10x32xf32, #tpu.memory_space<vmem>>, vector<8x32xf32>
    tpu.vector_store %arg14[%c1, %c0_19], %3 {strides = array<i32>} : memref<10x32xf32, #tpu.memory_space<vmem>>, vector<8x32xf32>,
    %c0_20 = arith.constant 0 : index
    %c0_21 = arith.constant 0 : index
    %23 = vector.load %arg14[%c0_20, %c0_21] : memref<10x32xf32, #tpu.memory_space<vmem>>, vector<8x32xf32>
    %c1_22 = arith.constant 1 : index
    %c0_23 = arith.constant 0 : index
    %24 = vector.load %arg14[%c1_22, %c0_23] : memref<10x32xf32, #tpu.memory_space<vmem>>, vector<8x32xf32>
    %c2 = arith.constant 2 : index
    %c0_24 = arith.constant 0 : index
    %25 = vector.load %arg14[%c2, %c0_24] : memref<10x32xf32, #tpu.memory_space<vmem>>, vector<8x32xf32>
    %26 = tpu.concatenate %23, %24, %25 in 1 : vector<8x32xf32>, vector<8x32xf32>, vector<8x32xf32> -> vector<8x96xf32>
    %27 = arith.truncf %26 : vector<8x96xf32> to vector<8x96xbf16>
    %cst_25 = arith.constant dense<0.000000e+00> : vector<8x32xf32>
    %28 = tpu.matmul %27, %11, %cst_25 {dimension_numbers = #tpu.dot_dimension_numbers<[1], [0], [0], [1], [0, 0, 1, 1], [], []>} : vector<8x96xbf16>, vector<96x32xbf16>, vector<8x32xf32> -> vector<8x32xf32>
    %29 = vector.extract_strided_slice %13 {offsets = [0, 0], sizes = [1, 32], strides = [1, 1]} : vector<4x32xf32> to vector<1x32xf32>
    %30 = vector.broadcast %29 : vector<1x32xf32> to vector<8x32xf32>
    %31 = arith.addf %28, %30 : vector<8x32xf32>
    %cst_26 = arith.constant 0.000000e+00 : f32
    %32 = vector.broadcast %cst_26 : f32 to vector<8x32xf32>
    %33 = arith.maximumf %31, %32 : vector<8x32xf32>
    %34 = vector.extract_strided_slice %13 {offsets = [1, 0], sizes = [1, 32], strides = [1, 1]} : vector<4x32xf32> to vector<1x32xf32>
    %35 = vector.extract_strided_slice %13 {offsets = [2, 0], sizes = [1, 32], strides = [1, 1]} : vector<4x32xf32> to vector<1x32xf32>
    %cst_27 = arith.constant dense<0.000000e+00> : vector<8xf32>
    %36 = vector.multi_reduction <add>, %33, %cst_27 [1] : vector<8x32xf32> to vector<8xf32>
    %37 = vector.shape_cast %36 : vector<8xf32> to vector<8x1xf32>
    %cst_28 = arith.constant 3.200000e+01 : f32
    %38 = vector.broadcast %cst_28 : f32 to vector<8x1xf32>
    %39 = arith.divf %37, %38 : vector<8x1xf32>
    %40 = vector.broadcast %39 : vector<8x1xf32> to vector<8x32xf32>
    %41 = arith.subf %33, %40 : vector<8x32xf32>
    %42 = arith.mulf %41, %41 : vector<8x32xf32>
    %cst_29 = arith.constant dense<0.000000e+00> : vector<8xf32>
    %43 = vector.multi_reduction <add>, %42, %cst_29 [1] : vector<8x32xf32> to vector<8xf32>
    %44 = vector.shape_cast %43 : vector<8xf32> to vector<8x1xf32>
    %cst_30 = arith.constant 3.200000e+01 : f32
    %45 = vector.broadcast %cst_30 : f32 to vector<8x1xf32>
    %46 = arith.divf %44, %45 : vector<8x1xf32>
    %47 = vector.broadcast %39 : vector<8x1xf32> to vector<8x32xf32>
    %48 = arith.subf %33, %47 : vector<8x32xf32>
    %cst_31 = arith.constant 9.99999974E-6 : f32
    %49 = vector.broadcast %cst_31 : f32 to vector<8x1xf32>
    %50 = arith.addf %46, %49 : vector<8x1xf32>
    %51 = math.rsqrt %50 : vector<8x1xf32>
    %52 = vector.broadcast %51 : vector<8x1xf32> to vector<8x32xf32>
    %53 = arith.mulf %48, %52 : vector<8x32xf32>
    %54 = vector.broadcast %34 : vector<1x32xf32> to vector<8x32xf32>
    %55 = arith.mulf %53, %54 : vector<8x32xf32>
    %56 = vector.broadcast %35 : vector<1x32xf32> to vector<8x32xf32>
    %57 = arith.addf %55, %56 : vector<8x32xf32>
    %cst_32 = arith.constant 0.000000e+00 : f32
    %58 = vector.broadcast %cst_32 : f32 to vector<10x32xf32>
    %c0_33 = arith.constant 0 : index
    %c0_34 = arith.constant 0 : index
    %59 = vector.load %arg14[%c0_33, %c0_34] : memref<10x32xf32, #tpu.memory_space<vmem>>, vector<10x32xf32>
    tpu.vector_store %arg14[%c0_33, %c0_34], %58 {strides = array<i32>} : memref<10x32xf32, #tpu.memory_space<vmem>>, vector<10x32xf32>,
    %c1_35 = arith.constant 1 : index
    %c0_36 = arith.constant 0 : index
    %60 = vector.load %arg14[%c1_35, %c0_36] : memref<10x32xf32, #tpu.memory_space<vmem>>, vector<8x32xf32>
    tpu.vector_store %arg14[%c1_35, %c0_36], %57 {strides = array<i32>} : memref<10x32xf32, #tpu.memory_space<vmem>>, vector<8x32xf32>,
    %c0_37 = arith.constant 0 : index
    %c0_38 = arith.constant 0 : index
    %61 = vector.load %arg14[%c0_37, %c0_38] : memref<10x32xf32, #tpu.memory_space<vmem>>, vector<8x32xf32>
    %c1_39 = arith.constant 1 : index
    %c0_40 = arith.constant 0 : index
    %62 = vector.load %arg14[%c1_39, %c0_40] : memref<10x32xf32, #tpu.memory_space<vmem>>, vector<8x32xf32>
    %c2_41 = arith.constant 2 : index
    %c0_42 = arith.constant 0 : index
    %63 = vector.load %arg14[%c2_41, %c0_42] : memref<10x32xf32, #tpu.memory_space<vmem>>, vector<8x32xf32>
    %64 = tpu.concatenate %61, %62, %63 in 1 : vector<8x32xf32>, vector<8x32xf32>, vector<8x32xf32> -> vector<8x96xf32>
    %65 = arith.truncf %64 : vector<8x96xf32> to vector<8x96xbf16>
    %cst_43 = arith.constant dense<0.000000e+00> : vector<8x32xf32>
    %66 = tpu.matmul %65, %15, %cst_43 {dimension_numbers = #tpu.dot_dimension_numbers<[1], [0], [0], [1], [0, 0, 1, 1], [], []>} : vector<8x96xbf16>, vector<96x32xbf16>, vector<8x32xf32> -> vector<8x32xf32>
    %67 = vector.extract_strided_slice %17 {offsets = [0, 0], sizes = [1, 32], strides = [1, 1]} : vector<3x32xf32> to vector<1x32xf32>
    %68 = vector.broadcast %67 : vector<1x32xf32> to vector<8x32xf32>
    %69 = arith.addf %66, %68 : vector<8x32xf32>
    %cst_44 = arith.constant 0.000000e+00 : f32
    %70 = vector.broadcast %cst_44 : f32 to vector<8x32xf32>
    %71 = arith.maximumf %69, %70 : vector<8x32xf32>
    %72 = vector.extract_strided_slice %17 {offsets = [1, 0], sizes = [1, 32], strides = [1, 1]} : vector<3x32xf32> to vector<1x32xf32>
    %73 = vector.extract_strided_slice %17 {offsets = [2, 0], sizes = [1, 32], strides = [1, 1]} : vector<3x32xf32> to vector<1x32xf32>
    %cst_45 = arith.constant dense<0.000000e+00> : vector<8xf32>
    %74 = vector.multi_reduction <add>, %71, %cst_45 [1] : vector<8x32xf32> to vector<8xf32>
    %75 = vector.shape_cast %74 : vector<8xf32> to vector<8x1xf32>
    %cst_46 = arith.constant 3.200000e+01 : f32
    %76 = vector.broadcast %cst_46 : f32 to vector<8x1xf32>
    %77 = arith.divf %75, %76 : vector<8x1xf32>
    %78 = vector.broadcast %77 : vector<8x1xf32> to vector<8x32xf32>
    %79 = arith.subf %71, %78 : vector<8x32xf32>
    %80 = arith.mulf %79, %79 : vector<8x32xf32>
    %cst_47 = arith.constant dense<0.000000e+00> : vector<8xf32>
    %81 = vector.multi_reduction <add>, %80, %cst_47 [1] : vector<8x32xf32> to vector<8xf32>
    %82 = vector.shape_cast %81 : vector<8xf32> to vector<8x1xf32>
    %cst_48 = arith.constant 3.200000e+01 : f32
    %83 = vector.broadcast %cst_48 : f32 to vector<8x1xf32>
    %84 = arith.divf %82, %83 : vector<8x1xf32>
    %85 = vector.broadcast %77 : vector<8x1xf32> to vector<8x32xf32>
    %86 = arith.subf %71, %85 : vector<8x32xf32>
    %cst_49 = arith.constant 9.99999974E-6 : f32
    %87 = vector.broadcast %cst_49 : f32 to vector<8x1xf32>
    %88 = arith.addf %84, %87 : vector<8x1xf32>
    %89 = math.rsqrt %88 : vector<8x1xf32>
    %90 = vector.broadcast %89 : vector<8x1xf32> to vector<8x32xf32>
    %91 = arith.mulf %86, %90 : vector<8x32xf32>
    %92 = vector.broadcast %72 : vector<1x32xf32> to vector<8x32xf32>
    %93 = arith.mulf %91, %92 : vector<8x32xf32>
    %94 = vector.broadcast %73 : vector<1x32xf32> to vector<8x32xf32>
    %95 = arith.addf %93, %94 : vector<8x32xf32>
    %96 = vector.extract_strided_slice %13 {offsets = [3, 0], sizes = [1, 32], strides = [1, 1]} : vector<4x32xf32> to vector<1x32xf32>
    %cst_50 = arith.constant dense<0.000000e+00> : vector<1x8xf32>
    %97 = tpu.matmul %96, %95, %cst_50 {dimension_numbers = #tpu.dot_dimension_numbers<[1], [1], [0], [0], [0, 0, 1, 0], [], []>} : vector<1x32xf32>, vector<8x32xf32>, vector<1x8xf32> -> vector<1x8xf32>
    %98 = vector.broadcast %19 : vector<1x1xf32> to vector<1x8xf32>
    %99 = arith.addf %97, %98 : vector<1x8xf32>
    %cst_51 = arith.constant 0.000000e+00 : f32
    %100 = vector.broadcast %cst_51 : f32 to vector<1x8xf32>
    %101 = arith.select %9, %100, %99 : vector<1x8xi1>, vector<1x8xf32>
    %c1_52 = arith.constant 1 : index
    %c0_53 = arith.constant 0 : index
    %c0_54 = arith.constant 0 : index
    %102 = vector.load %arg3[%c1_52, %c0_53, %c0_54] : memref<3x96x32xbf16, #tpu.memory_space<vmem>>, vector<1x96x32xbf16>
    %103 = vector.shape_cast %102 : vector<1x96x32xbf16> to vector<96x32xbf16>
    %c1_55 = arith.constant 1 : index
    %c0_56 = arith.constant 0 : index
    %c0_57 = arith.constant 0 : index
    %104 = vector.load %arg4[%c1_55, %c0_56, %c0_57] : memref<3x4x32xf32, #tpu.memory_space<vmem>>, vector<1x4x32xf32>
    %105 = vector.shape_cast %104 : vector<1x4x32xf32> to vector<4x32xf32>
    %c1_58 = arith.constant 1 : index
    %c0_59 = arith.constant 0 : index
    %c0_60 = arith.constant 0 : index
    %106 = vector.load %arg5[%c1_58, %c0_59, %c0_60] : memref<3x96x32xbf16, #tpu.memory_space<vmem>>, vector<1x96x32xbf16>
    %107 = vector.shape_cast %106 : vector<1x96x32xbf16> to vector<96x32xbf16>
    %c1_61 = arith.constant 1 : index
    %c0_62 = arith.constant 0 : index
    %c0_63 = arith.constant 0 : index
    %108 = vector.load %arg6[%c1_61, %c0_62, %c0_63] : memref<3x3x32xf32, #tpu.memory_space<vmem>>, vector<1x3x32xf32>
    %109 = vector.shape_cast %108 : vector<1x3x32xf32> to vector<3x32xf32>
    %c1_64 = arith.constant 1 : index
    %c0_65 = arith.constant 0 : index
    %c0_66 = arith.constant 0 : index
    %110 = vector.load %arg7[%c1_64, %c0_65, %c0_66] : memref<3x1x1xf32, #tpu.memory_space<vmem>>, vector<1x1x1xf32>
    %111 = vector.shape_cast %110 : vector<1x1x1xf32> to vector<1x1xf32>
    %cst_67 = arith.constant 0.000000e+00 : f32
    %112 = vector.broadcast %cst_67 : f32 to vector<10x32xf32>
    %c0_68 = arith.constant 0 : index
    %c0_69 = arith.constant 0 : index
    %113 = vector.load %arg14[%c0_68, %c0_69] : memref<10x32xf32, #tpu.memory_space<vmem>>, vector<10x32xf32>
    tpu.vector_store %arg14[%c0_68, %c0_69], %112 {strides = array<i32>} : memref<10x32xf32, #tpu.memory_space<vmem>>, vector<10x32xf32>,
    %c1_70 = arith.constant 1 : index
    %c0_71 = arith.constant 0 : index
    %114 = vector.load %arg14[%c1_70, %c0_71] : memref<10x32xf32, #tpu.memory_space<vmem>>, vector<8x32xf32>
    tpu.vector_store %arg14[%c1_70, %c0_71], %3 {strides = array<i32>} : memref<10x32xf32, #tpu.memory_space<vmem>>, vector<8x32xf32>,
    %c0_72 = arith.constant 0 : index
    %c0_73 = arith.constant 0 : index
    %115 = vector.load %arg14[%c0_72, %c0_73] : memref<10x32xf32, #tpu.memory_space<vmem>>, vector<8x32xf32>
    %c1_74 = arith.constant 1 : index
    %c0_75 = arith.constant 0 : index
    %116 = vector.load %arg14[%c1_74, %c0_75] : memref<10x32xf32, #tpu.memory_space<vmem>>, vector<8x32xf32>
    %c2_76 = arith.constant 2 : index
    %c0_77 = arith.constant 0 : index
    %117 = vector.load %arg14[%c2_76, %c0_77] : memref<10x32xf32, #tpu.memory_space<vmem>>, vector<8x32xf32>
    %118 = tpu.concatenate %115, %116, %117 in 1 : vector<8x32xf32>, vector<8x32xf32>, vector<8x32xf32> -> vector<8x96xf32>
    %119 = arith.truncf %118 : vector<8x96xf32> to vector<8x96xbf16>
    %cst_78 = arith.constant dense<0.000000e+00> : vector<8x32xf32>
    %120 = tpu.matmul %119, %103, %cst_78 {dimension_numbers = #tpu.dot_dimension_numbers<[1], [0], [0], [1], [0, 0, 1, 1], [], []>} : vector<8x96xbf16>, vector<96x32xbf16>, vector<8x32xf32> -> vector<8x32xf32>
    %121 = vector.extract_strided_slice %105 {offsets = [0, 0], sizes = [1, 32], strides = [1, 1]} : vector<4x32xf32> to vector<1x32xf32>
    %122 = vector.broadcast %121 : vector<1x32xf32> to vector<8x32xf32>
    %123 = arith.addf %120, %122 : vector<8x32xf32>
    %cst_79 = arith.constant 0.000000e+00 : f32
    %124 = vector.broadcast %cst_79 : f32 to vector<8x32xf32>
    %125 = arith.maximumf %123, %124 : vector<8x32xf32>
    %126 = vector.extract_strided_slice %105 {offsets = [1, 0], sizes = [1, 32], strides = [1, 1]} : vector<4x32xf32> to vector<1x32xf32>
    %127 = vector.extract_strided_slice %105 {offsets = [2, 0], sizes = [1, 32], strides = [1, 1]} : vector<4x32xf32> to vector<1x32xf32>
    %cst_80 = arith.constant dense<0.000000e+00> : vector<8xf32>
    %128 = vector.multi_reduction <add>, %125, %cst_80 [1] : vector<8x32xf32> to vector<8xf32>
    %129 = vector.shape_cast %128 : vector<8xf32> to vector<8x1xf32>
    %cst_81 = arith.constant 3.200000e+01 : f32
    %130 = vector.broadcast %cst_81 : f32 to vector<8x1xf32>
    %131 = arith.divf %129, %130 : vector<8x1xf32>
    %132 = vector.broadcast %131 : vector<8x1xf32> to vector<8x32xf32>
    %133 = arith.subf %125, %132 : vector<8x32xf32>
    %134 = arith.mulf %133, %133 : vector<8x32xf32>
    %cst_82 = arith.constant dense<0.000000e+00> : vector<8xf32>
    %135 = vector.multi_reduction <add>, %134, %cst_82 [1] : vector<8x32xf32> to vector<8xf32>
    %136 = vector.shape_cast %135 : vector<8xf32> to vector<8x1xf32>
    %cst_83 = arith.constant 3.200000e+01 : f32
    %137 = vector.broadcast %cst_83 : f32 to vector<8x1xf32>
    %138 = arith.divf %136, %137 : vector<8x1xf32>
    %139 = vector.broadcast %131 : vector<8x1xf32> to vector<8x32xf32>
    %140 = arith.subf %125, %139 : vector<8x32xf32>
    %cst_84 = arith.constant 9.99999974E-6 : f32
    %141 = vector.broadcast %cst_84 : f32 to vector<8x1xf32>
    %142 = arith.addf %138, %141 : vector<8x1xf32>
    %143 = math.rsqrt %142 : vector<8x1xf32>
    %144 = vector.broadcast %143 : vector<8x1xf32> to vector<8x32xf32>
    %145 = arith.mulf %140, %144 : vector<8x32xf32>
    %146 = vector.broadcast %126 : vector<1x32xf32> to vector<8x32xf32>
    %147 = arith.mulf %145, %146 : vector<8x32xf32>
    %148 = vector.broadcast %127 : vector<1x32xf32> to vector<8x32xf32>
    %149 = arith.addf %147, %148 : vector<8x32xf32>
    %cst_85 = arith.constant 0.000000e+00 : f32
    %150 = vector.broadcast %cst_85 : f32 to vector<10x32xf32>
    %c0_86 = arith.constant 0 : index
    %c0_87 = arith.constant 0 : index
    %151 = vector.load %arg14[%c0_86, %c0_87] : memref<10x32xf32, #tpu.memory_space<vmem>>, vector<10x32xf32>
    tpu.vector_store %arg14[%c0_86, %c0_87], %150 {strides = array<i32>} : memref<10x32xf32, #tpu.memory_space<vmem>>, vector<10x32xf32>,
    %c1_88 = arith.constant 1 : index
    %c0_89 = arith.constant 0 : index
    %152 = vector.load %arg14[%c1_88, %c0_89] : memref<10x32xf32, #tpu.memory_space<vmem>>, vector<8x32xf32>
    tpu.vector_store %arg14[%c1_88, %c0_89], %149 {strides = array<i32>} : memref<10x32xf32, #tpu.memory_space<vmem>>, vector<8x32xf32>,
    %c0_90 = arith.constant 0 : index
    %c0_91 = arith.constant 0 : index
    %153 = vector.load %arg14[%c0_90, %c0_91] : memref<10x32xf32, #tpu.memory_space<vmem>>, vector<8x32xf32>
    %c1_92 = arith.constant 1 : index
    %c0_93 = arith.constant 0 : index
    %154 = vector.load %arg14[%c1_92, %c0_93] : memref<10x32xf32, #tpu.memory_space<vmem>>, vector<8x32xf32>
    %c2_94 = arith.constant 2 : index
    %c0_95 = arith.constant 0 : index
    %155 = vector.load %arg14[%c2_94, %c0_95] : memref<10x32xf32, #tpu.memory_space<vmem>>, vector<8x32xf32>
    %156 = tpu.concatenate %153, %154, %155 in 1 : vector<8x32xf32>, vector<8x32xf32>, vector<8x32xf32> -> vector<8x96xf32>
    %157 = arith.truncf %156 : vector<8x96xf32> to vector<8x96xbf16>
    %cst_96 = arith.constant dense<0.000000e+00> : vector<8x32xf32>
    %158 = tpu.matmul %157, %107, %cst_96 {dimension_numbers = #tpu.dot_dimension_numbers<[1], [0], [0], [1], [0, 0, 1, 1], [], []>} : vector<8x96xbf16>, vector<96x32xbf16>, vector<8x32xf32> -> vector<8x32xf32>
    %159 = vector.extract_strided_slice %109 {offsets = [0, 0], sizes = [1, 32], strides = [1, 1]} : vector<3x32xf32> to vector<1x32xf32>
    %160 = vector.broadcast %159 : vector<1x32xf32> to vector<8x32xf32>
    %161 = arith.addf %158, %160 : vector<8x32xf32>
    %cst_97 = arith.constant 0.000000e+00 : f32
    %162 = vector.broadcast %cst_97 : f32 to vector<8x32xf32>
    %163 = arith.maximumf %161, %162 : vector<8x32xf32>
    %164 = vector.extract_strided_slice %109 {offsets = [1, 0], sizes = [1, 32], strides = [1, 1]} : vector<3x32xf32> to vector<1x32xf32>
    %165 = vector.extract_strided_slice %109 {offsets = [2, 0], sizes = [1, 32], strides = [1, 1]} : vector<3x32xf32> to vector<1x32xf32>
    %cst_98 = arith.constant dense<0.000000e+00> : vector<8xf32>
    %166 = vector.multi_reduction <add>, %163, %cst_98 [1] : vector<8x32xf32> to vector<8xf32>
    %167 = vector.shape_cast %166 : vector<8xf32> to vector<8x1xf32>
    %cst_99 = arith.constant 3.200000e+01 : f32
    %168 = vector.broadcast %cst_99 : f32 to vector<8x1xf32>
    %169 = arith.divf %167, %168 : vector<8x1xf32>
    %170 = vector.broadcast %169 : vector<8x1xf32> to vector<8x32xf32>
    %171 = arith.subf %163, %170 : vector<8x32xf32>
    %172 = arith.mulf %171, %171 : vector<8x32xf32>
    %cst_100 = arith.constant dense<0.000000e+00> : vector<8xf32>
    %173 = vector.multi_reduction <add>, %172, %cst_100 [1] : vector<8x32xf32> to vector<8xf32>
    %174 = vector.shape_cast %173 : vector<8xf32> to vector<8x1xf32>
    %cst_101 = arith.constant 3.200000e+01 : f32
    %175 = vector.broadcast %cst_101 : f32 to vector<8x1xf32>
    %176 = arith.divf %174, %175 : vector<8x1xf32>
    %177 = vector.broadcast %169 : vector<8x1xf32> to vector<8x32xf32>
    %178 = arith.subf %163, %177 : vector<8x32xf32>
    %cst_102 = arith.constant 9.99999974E-6 : f32
    %179 = vector.broadcast %cst_102 : f32 to vector<8x1xf32>
    %180 = arith.addf %176, %179 : vector<8x1xf32>
    %181 = math.rsqrt %180 : vector<8x1xf32>
    %182 = vector.broadcast %181 : vector<8x1xf32> to vector<8x32xf32>
    %183 = arith.mulf %178, %182 : vector<8x32xf32>
    %184 = vector.broadcast %164 : vector<1x32xf32> to vector<8x32xf32>
    %185 = arith.mulf %183, %184 : vector<8x32xf32>
    %186 = vector.broadcast %165 : vector<1x32xf32> to vector<8x32xf32>
    %187 = arith.addf %185, %186 : vector<8x32xf32>
    %188 = vector.extract_strided_slice %105 {offsets = [3, 0], sizes = [1, 32], strides = [1, 1]} : vector<4x32xf32> to vector<1x32xf32>
    %189 = vector.broadcast %188 : vector<1x32xf32> to vector<8x32xf32>
    %190 = arith.mulf %187, %189 : vector<8x32xf32>
    %cst_103 = arith.constant dense<0.000000e+00> : vector<8xf32>
    %191 = vector.multi_reduction <add>, %190, %cst_103 [1] : vector<8x32xf32> to vector<8xf32>
    %192 = vector.shape_cast %191 : vector<8xf32> to vector<8x1xf32>
    %193 = vector.broadcast %111 : vector<1x1xf32> to vector<8x1xf32>
    %194 = arith.addf %192, %193 : vector<8x1xf32>
    %cst_104 = arith.constant dense<0.000000e+00> : vector<1x8xf32>
    %195 = tpu.matmul %188, %187, %cst_104 {dimension_numbers = #tpu.dot_dimension_numbers<[1], [1], [0], [0], [0, 0, 1, 0], [], []>} : vector<1x32xf32>, vector<8x32xf32>, vector<1x8xf32> -> vector<1x8xf32>
    %196 = vector.broadcast %111 : vector<1x1xf32> to vector<1x8xf32>
    %197 = arith.addf %195, %196 : vector<1x8xf32>
    %cst_105 = arith.constant 0.000000e+00 : f32
    %198 = vector.broadcast %cst_105 : f32 to vector<8x1xf32>
    %199 = arith.select %6, %198, %194 : vector<8x1xi1>, vector<8x1xf32>
    %cst_106 = arith.constant 0.000000e+00 : f32
    %200 = vector.broadcast %cst_106 : f32 to vector<1x8xf32>
    %201 = arith.select %9, %200, %197 : vector<1x8xi1>, vector<1x8xf32>
    %cst_107 = arith.constant 1.000000e+00 : f32
    %202 = vector.broadcast %cst_107 : f32 to vector<8x1xf32>
    %203 = arith.mulf %199, %202 : vector<8x1xf32>
    %cst_108 = arith.constant 1.000000e+00 : f32
    %204 = vector.broadcast %cst_108 : f32 to vector<1x8xf32>
    %205 = arith.mulf %201, %204 : vector<1x8xf32>
    %c0_109 = arith.constant 0 : index
    %c0_110 = arith.constant 0 : index
    %206 = vector.load %arg8[%c0_109, %c0_110] : memref<1x15xf32, #tpu.memory_space<vmem>>, vector<1x15xf32>
    %207 = vector.broadcast %203 : vector<8x1xf32> to vector<8x15xf32>
    %208 = vector.broadcast %206 : vector<1x15xf32> to vector<8x15xf32>
    %209 = arith.cmpf ogt, %207, %208 : vector<8x15xf32>
    %210 = arith.extui %209 : vector<8x15xi1> to vector<8x15xi32>
    %cst_111 = arith.constant dense<0> : vector<8xi32>
    %211 = vector.multi_reduction <add>, %210, %cst_111 [1] : vector<8x15xi32> to vector<8xi32>
    %212 = vector.shape_cast %211 : vector<8xi32> to vector<8x1xi32>
    %213 = tpu.iota {dimensions = array<i32: 1>} : vector<8x16xi32>
    %214 = vector.broadcast %212 : vector<8x1xi32> to vector<8x16xi32>
    %215 = arith.cmpi eq, %214, %213 : vector<8x16xi32>
    %216 = arith.extui %215 : vector<8x16xi1> to vector<8x16xi32>
    %217 = arith.sitofp %216 : vector<8x16xi32> to vector<8x16xf32>
    %c0_112 = arith.constant 0 : index
    %c0_113 = arith.constant 0 : index
    %218 = vector.load %arg10[%c0_112, %c0_113] : memref<16x32xf32, #tpu.memory_space<vmem>>, vector<16x32xf32>
    %cst_114 = arith.constant dense<0.000000e+00> : vector<8x32xf32>
    %219 = tpu.matmul %217, %218, %cst_114 {dimension_numbers = #tpu.dot_dimension_numbers<[1], [0], [0], [1], [0, 0, 1, 1], [], []>} : vector<8x16xf32>, vector<16x32xf32>, vector<8x32xf32> -> vector<8x32xf32>
    %220 = arith.addf %3, %219 : vector<8x32xf32>
    %c2_115 = arith.constant 2 : index
    %c0_116 = arith.constant 0 : index
    %c0_117 = arith.constant 0 : index
    %221 = vector.load %arg3[%c2_115, %c0_116, %c0_117] : memref<3x96x32xbf16, #tpu.memory_space<vmem>>, vector<1x96x32xbf16>
    %222 = vector.shape_cast %221 : vector<1x96x32xbf16> to vector<96x32xbf16>
    %c2_118 = arith.constant 2 : index
    %c0_119 = arith.constant 0 : index
    %c0_120 = arith.constant 0 : index
    %223 = vector.load %arg4[%c2_118, %c0_119, %c0_120] : memref<3x4x32xf32, #tpu.memory_space<vmem>>, vector<1x4x32xf32>
    %224 = vector.shape_cast %223 : vector<1x4x32xf32> to vector<4x32xf32>
    %c2_121 = arith.constant 2 : index
    %c0_122 = arith.constant 0 : index
    %c0_123 = arith.constant 0 : index
    %225 = vector.load %arg5[%c2_121, %c0_122, %c0_123] : memref<3x96x32xbf16, #tpu.memory_space<vmem>>, vector<1x96x32xbf16>
    %226 = vector.shape_cast %225 : vector<1x96x32xbf16> to vector<96x32xbf16>
    %c2_124 = arith.constant 2 : index
    %c0_125 = arith.constant 0 : index
    %c0_126 = arith.constant 0 : index
    %227 = vector.load %arg6[%c2_124, %c0_125, %c0_126] : memref<3x3x32xf32, #tpu.memory_space<vmem>>, vector<1x3x32xf32>
    %228 = vector.shape_cast %227 : vector<1x3x32xf32> to vector<3x32xf32>
    %c2_127 = arith.constant 2 : index
    %c0_128 = arith.constant 0 : index
    %c0_129 = arith.constant 0 : index
    %229 = vector.load %arg7[%c2_127, %c0_128, %c0_129] : memref<3x1x1xf32, #tpu.memory_space<vmem>>, vector<1x1x1xf32>
    %230 = vector.shape_cast %229 : vector<1x1x1xf32> to vector<1x1xf32>
    %cst_130 = arith.constant 0.000000e+00 : f32
    %231 = vector.broadcast %cst_130 : f32 to vector<10x32xf32>
    %c0_131 = arith.constant 0 : index
    %c0_132 = arith.constant 0 : index
    %232 = vector.load %arg14[%c0_131, %c0_132] : memref<10x32xf32, #tpu.memory_space<vmem>>, vector<10x32xf32>
    tpu.vector_store %arg14[%c0_131, %c0_132], %231 {strides = array<i32>} : memref<10x32xf32, #tpu.memory_space<vmem>>, vector<10x32xf32>,
    %c1_133 = arith.constant 1 : index
    %c0_134 = arith.constant 0 : index
    %233 = vector.load %arg14[%c1_133, %c0_134] : memref<10x32xf32, #tpu.memory_space<vmem>>, vector<8x32xf32>
    tpu.vector_store %arg14[%c1_133, %c0_134], %220 {strides = array<i32>} : memref<10x32xf32, #tpu.memory_space<vmem>>, vector<8x32xf32>,
    %c0_135 = arith.constant 0 : index
    %c0_136 = arith.constant 0 : index
    %234 = vector.load %arg14[%c0_135, %c0_136] : memref<10x32xf32, #tpu.memory_space<vmem>>, vector<8x32xf32>
    %c1_137 = arith.constant 1 : index
    %c0_138 = arith.constant 0 : index
    %235 = vector.load %arg14[%c1_137, %c0_138] : memref<10x32xf32, #tpu.memory_space<vmem>>, vector<8x32xf32>
    %c2_139 = arith.constant 2 : index
    %c0_140 = arith.constant 0 : index
    %236 = vector.load %arg14[%c2_139, %c0_140] : memref<10x32xf32, #tpu.memory_space<vmem>>, vector<8x32xf32>
    %237 = tpu.concatenate %234, %235, %236 in 1 : vector<8x32xf32>, vector<8x32xf32>, vector<8x32xf32> -> vector<8x96xf32>
    %238 = arith.truncf %237 : vector<8x96xf32> to vector<8x96xbf16>
    %cst_141 = arith.constant dense<0.000000e+00> : vector<8x32xf32>
    %239 = tpu.matmul %238, %222, %cst_141 {dimension_numbers = #tpu.dot_dimension_numbers<[1], [0], [0], [1], [0, 0, 1, 1], [], []>} : vector<8x96xbf16>, vector<96x32xbf16>, vector<8x32xf32> -> vector<8x32xf32>
    %240 = vector.extract_strided_slice %224 {offsets = [0, 0], sizes = [1, 32], strides = [1, 1]} : vector<4x32xf32> to vector<1x32xf32>
    %241 = vector.broadcast %240 : vector<1x32xf32> to vector<8x32xf32>
    %242 = arith.addf %239, %241 : vector<8x32xf32>
    %cst_142 = arith.constant 0.000000e+00 : f32
    %243 = vector.broadcast %cst_142 : f32 to vector<8x32xf32>
    %244 = arith.maximumf %242, %243 : vector<8x32xf32>
    %245 = vector.extract_strided_slice %224 {offsets = [1, 0], sizes = [1, 32], strides = [1, 1]} : vector<4x32xf32> to vector<1x32xf32>
    %246 = vector.extract_strided_slice %224 {offsets = [2, 0], sizes = [1, 32], strides = [1, 1]} : vector<4x32xf32> to vector<1x32xf32>
    %cst_143 = arith.constant dense<0.000000e+00> : vector<8xf32>
    %247 = vector.multi_reduction <add>, %244, %cst_143 [1] : vector<8x32xf32> to vector<8xf32>
    %248 = vector.shape_cast %247 : vector<8xf32> to vector<8x1xf32>
    %cst_144 = arith.constant 3.200000e+01 : f32
    %249 = vector.broadcast %cst_144 : f32 to vector<8x1xf32>
    %250 = arith.divf %248, %249 : vector<8x1xf32>
    %251 = vector.broadcast %250 : vector<8x1xf32> to vector<8x32xf32>
    %252 = arith.subf %244, %251 : vector<8x32xf32>
    %253 = arith.mulf %252, %252 : vector<8x32xf32>
    %cst_145 = arith.constant dense<0.000000e+00> : vector<8xf32>
    %254 = vector.multi_reduction <add>, %253, %cst_145 [1] : vector<8x32xf32> to vector<8xf32>
    %255 = vector.shape_cast %254 : vector<8xf32> to vector<8x1xf32>
    %cst_146 = arith.constant 3.200000e+01 : f32
    %256 = vector.broadcast %cst_146 : f32 to vector<8x1xf32>
    %257 = arith.divf %255, %256 : vector<8x1xf32>
    %258 = vector.broadcast %250 : vector<8x1xf32> to vector<8x32xf32>
    %259 = arith.subf %244, %258 : vector<8x32xf32>
    %cst_147 = arith.constant 9.99999974E-6 : f32
    %260 = vector.broadcast %cst_147 : f32 to vector<8x1xf32>
    %261 = arith.addf %257, %260 : vector<8x1xf32>
    %262 = math.rsqrt %261 : vector<8x1xf32>
    %263 = vector.broadcast %262 : vector<8x1xf32> to vector<8x32xf32>
    %264 = arith.mulf %259, %263 : vector<8x32xf32>
    %265 = vector.broadcast %245 : vector<1x32xf32> to vector<8x32xf32>
    %266 = arith.mulf %264, %265 : vector<8x32xf32>
    %267 = vector.broadcast %246 : vector<1x32xf32> to vector<8x32xf32>
    %268 = arith.addf %266, %267 : vector<8x32xf32>
    %cst_148 = arith.constant 0.000000e+00 : f32
    %269 = vector.broadcast %cst_148 : f32 to vector<10x32xf32>
    %c0_149 = arith.constant 0 : index
    %c0_150 = arith.constant 0 : index
    %270 = vector.load %arg14[%c0_149, %c0_150] : memref<10x32xf32, #tpu.memory_space<vmem>>, vector<10x32xf32>
    tpu.vector_store %arg14[%c0_149, %c0_150], %269 {strides = array<i32>} : memref<10x32xf32, #tpu.memory_space<vmem>>, vector<10x32xf32>,
    %c1_151 = arith.constant 1 : index
    %c0_152 = arith.constant 0 : index
    %271 = vector.load %arg14[%c1_151, %c0_152] : memref<10x32xf32, #tpu.memory_space<vmem>>, vector<8x32xf32>
    tpu.vector_store %arg14[%c1_151, %c0_152], %268 {strides = array<i32>} : memref<10x32xf32, #tpu.memory_space<vmem>>, vector<8x32xf32>,
    %c0_153 = arith.constant 0 : index
    %c0_154 = arith.constant 0 : index
    %272 = vector.load %arg14[%c0_153, %c0_154] : memref<10x32xf32, #tpu.memory_space<vmem>>, vector<8x32xf32>
    %c1_155 = arith.constant 1 : index
    %c0_156 = arith.constant 0 : index
    %273 = vector.load %arg14[%c1_155, %c0_156] : memref<10x32xf32, #tpu.memory_space<vmem>>, vector<8x32xf32>
    %c2_157 = arith.constant 2 : index
    %c0_158 = arith.constant 0 : index
    %274 = vector.load %arg14[%c2_157, %c0_158] : memref<10x32xf32, #tpu.memory_space<vmem>>, vector<8x32xf32>
    %275 = tpu.concatenate %272, %273, %274 in 1 : vector<8x32xf32>, vector<8x32xf32>, vector<8x32xf32> -> vector<8x96xf32>
    %276 = arith.truncf %275 : vector<8x96xf32> to vector<8x96xbf16>
    %cst_159 = arith.constant dense<0.000000e+00> : vector<8x32xf32>
    %277 = tpu.matmul %276, %226, %cst_159 {dimension_numbers = #tpu.dot_dimension_numbers<[1], [0], [0], [1], [0, 0, 1, 1], [], []>} : vector<8x96xbf16>, vector<96x32xbf16>, vector<8x32xf32> -> vector<8x32xf32>
    %278 = vector.extract_strided_slice %228 {offsets = [0, 0], sizes = [1, 32], strides = [1, 1]} : vector<3x32xf32> to vector<1x32xf32>
    %279 = vector.broadcast %278 : vector<1x32xf32> to vector<8x32xf32>
    %280 = arith.addf %277, %279 : vector<8x32xf32>
    %cst_160 = arith.constant 0.000000e+00 : f32
    %281 = vector.broadcast %cst_160 : f32 to vector<8x32xf32>
    %282 = arith.maximumf %280, %281 : vector<8x32xf32>
    %283 = vector.extract_strided_slice %228 {offsets = [1, 0], sizes = [1, 32], strides = [1, 1]} : vector<3x32xf32> to vector<1x32xf32>
    %284 = vector.extract_strided_slice %228 {offsets = [2, 0], sizes = [1, 32], strides = [1, 1]} : vector<3x32xf32> to vector<1x32xf32>
    %cst_161 = arith.constant dense<0.000000e+00> : vector<8xf32>
    %285 = vector.multi_reduction <add>, %282, %cst_161 [1] : vector<8x32xf32> to vector<8xf32>
    %286 = vector.shape_cast %285 : vector<8xf32> to vector<8x1xf32>
    %cst_162 = arith.constant 3.200000e+01 : f32
    %287 = vector.broadcast %cst_162 : f32 to vector<8x1xf32>
    %288 = arith.divf %286, %287 : vector<8x1xf32>
    %289 = vector.broadcast %288 : vector<8x1xf32> to vector<8x32xf32>
    %290 = arith.subf %282, %289 : vector<8x32xf32>
    %291 = arith.mulf %290, %290 : vector<8x32xf32>
    %cst_163 = arith.constant dense<0.000000e+00> : vector<8xf32>
    %292 = vector.multi_reduction <add>, %291, %cst_163 [1] : vector<8x32xf32> to vector<8xf32>
    %293 = vector.shape_cast %292 : vector<8xf32> to vector<8x1xf32>
    %cst_164 = arith.constant 3.200000e+01 : f32
    %294 = vector.broadcast %cst_164 : f32 to vector<8x1xf32>
    %295 = arith.divf %293, %294 : vector<8x1xf32>
    %296 = vector.broadcast %288 : vector<8x1xf32> to vector<8x32xf32>
    %297 = arith.subf %282, %296 : vector<8x32xf32>
    %cst_165 = arith.constant 9.99999974E-6 : f32
    %298 = vector.broadcast %cst_165 : f32 to vector<8x1xf32>
    %299 = arith.addf %295, %298 : vector<8x1xf32>
    %300 = math.rsqrt %299 : vector<8x1xf32>
    %301 = vector.broadcast %300 : vector<8x1xf32> to vector<8x32xf32>
    %302 = arith.mulf %297, %301 : vector<8x32xf32>
    %303 = vector.broadcast %283 : vector<1x32xf32> to vector<8x32xf32>
    %304 = arith.mulf %302, %303 : vector<8x32xf32>
    %305 = vector.broadcast %284 : vector<1x32xf32> to vector<8x32xf32>
    %306 = arith.addf %304, %305 : vector<8x32xf32>
    %307 = vector.extract_strided_slice %224 {offsets = [3, 0], sizes = [1, 32], strides = [1, 1]} : vector<4x32xf32> to vector<1x32xf32>
    %308 = vector.broadcast %307 : vector<1x32xf32> to vector<8x32xf32>
    %309 = arith.mulf %306, %308 : vector<8x32xf32>
    %cst_166 = arith.constant dense<0.000000e+00> : vector<8xf32>
    %310 = vector.multi_reduction <add>, %309, %cst_166 [1] : vector<8x32xf32> to vector<8xf32>
    %311 = vector.shape_cast %310 : vector<8xf32> to vector<8x1xf32>
    %312 = vector.broadcast %230 : vector<1x1xf32> to vector<8x1xf32>
    %313 = arith.addf %311, %312 : vector<8x1xf32>
    %cst_167 = arith.constant dense<0.000000e+00> : vector<1x8xf32>
    %314 = tpu.matmul %307, %306, %cst_167 {dimension_numbers = #tpu.dot_dimension_numbers<[1], [1], [0], [0], [0, 0, 1, 0], [], []>} : vector<1x32xf32>, vector<8x32xf32>, vector<1x8xf32> -> vector<1x8xf32>
    %315 = vector.broadcast %230 : vector<1x1xf32> to vector<1x8xf32>
    %316 = arith.addf %314, %315 : vector<1x8xf32>
    %cst_168 = arith.constant 0.000000e+00 : f32
    %317 = vector.broadcast %cst_168 : f32 to vector<8x1xf32>
    %318 = arith.select %6, %317, %313 : vector<8x1xi1>, vector<8x1xf32>
    %cst_169 = arith.constant 0.000000e+00 : f32
    %319 = vector.broadcast %cst_169 : f32 to vector<1x8xf32>
    %320 = arith.select %9, %319, %316 : vector<1x8xi1>, vector<1x8xf32>
    %cst_170 = arith.constant 1.000000e+00 : f32
    %321 = vector.broadcast %cst_170 : f32 to vector<8x1xf32>
    %322 = arith.mulf %318, %321 : vector<8x1xf32>
    %cst_171 = arith.constant 1.000000e+00 : f32
    %323 = vector.broadcast %cst_171 : f32 to vector<1x8xf32>
    %324 = arith.mulf %320, %323 : vector<1x8xf32>
    %c0_172 = arith.constant 0 : index
    %c0_173 = arith.constant 0 : index
    %325 = vector.load %arg9[%c0_172, %c0_173] : memref<1x15xf32, #tpu.memory_space<vmem>>, vector<1x15xf32>
    %326 = vector.broadcast %322 : vector<8x1xf32> to vector<8x15xf32>
    %327 = vector.broadcast %325 : vector<1x15xf32> to vector<8x15xf32>
    %328 = arith.cmpf ogt, %326, %327 : vector<8x15xf32>
    %329 = arith.extui %328 : vector<8x15xi1> to vector<8x15xi32>
    %cst_174 = arith.constant dense<0> : vector<8xi32>
    %330 = vector.multi_reduction <add>, %329, %cst_174 [1] : vector<8x15xi32> to vector<8xi32>
    %331 = vector.shape_cast %330 : vector<8xi32> to vector<8x1xi32>
    %332 = tpu.iota {dimensions = array<i32: 1>} : vector<8x16xi32>
    %333 = vector.broadcast %331 : vector<8x1xi32> to vector<8x16xi32>
    %334 = arith.cmpi eq, %333, %332 : vector<8x16xi32>
    %335 = arith.extui %334 : vector<8x16xi1> to vector<8x16xi32>
    %336 = arith.sitofp %335 : vector<8x16xi32> to vector<8x16xf32>
    %c0_175 = arith.constant 0 : index
    %c0_176 = arith.constant 0 : index
    %337 = vector.load %arg11[%c0_175, %c0_176] : memref<16x32xf32, #tpu.memory_space<vmem>>, vector<16x32xf32>
    %cst_177 = arith.constant dense<0.000000e+00> : vector<8x32xf32>
    %338 = tpu.matmul %336, %337, %cst_177 {dimension_numbers = #tpu.dot_dimension_numbers<[1], [0], [0], [1], [0, 0, 1, 1], [], []>} : vector<8x16xf32>, vector<16x32xf32>, vector<8x32xf32> -> vector<8x32xf32>
    %339 = arith.addf %220, %338 : vector<8x32xf32>
    %c0_178 = arith.constant 0 : index
    %c0_179 = arith.constant 0 : index
    %c0_180 = arith.constant 0 : index
    %340 = vector.load %arg12[%c0_178, %c0_179, %c0_180] : memref<1x8x32xf32, #tpu.memory_space<vmem>>, vector<1x8x32xf32>
    %341 = vector.shape_cast %340 : vector<1x8x32xf32> to vector<8x32xf32>
    %342 = vector.shape_cast %339 : vector<8x32xf32> to vector<1x8x32xf32>
    tpu.vector_store %arg12[%c0_178, %c0_179, %c0_180], %342 {strides = array<i32>} : memref<1x8x32xf32, #tpu.memory_space<vmem>>, vector<1x8x32xf32>,
    %c0_181 = arith.constant 0 : index
    %c0_182 = arith.constant 0 : index
    %c0_183 = arith.constant 0 : index
    %343 = vector.load %arg13[%c0_181, %c0_182, %c0_183] : memref<1x3x8xf32, #tpu.memory_space<vmem>>, vector<1x1x8xf32>
    %344 = vector.shape_cast %343 : vector<1x1x8xf32> to vector<1x8xf32>
    %345 = vector.shape_cast %101 : vector<1x8xf32> to vector<1x1x8xf32>
    tpu.vector_store %arg13[%c0_181, %c0_182, %c0_183], %345 {strides = array<i32>} : memref<1x3x8xf32, #tpu.memory_space<vmem>>, vector<1x1x8xf32>,
    %c0_184 = arith.constant 0 : index
    %c1_185 = arith.constant 1 : index
    %c0_186 = arith.constant 0 : index
    %346 = vector.load %arg13[%c0_184, %c1_185, %c0_186] : memref<1x3x8xf32, #tpu.memory_space<vmem>>, vector<1x1x8xf32>
    %347 = vector.shape_cast %346 : vector<1x1x8xf32> to vector<1x8xf32>
    %348 = vector.shape_cast %205 : vector<1x8xf32> to vector<1x1x8xf32>
    tpu.vector_store %arg13[%c0_184, %c1_185, %c0_186], %348 {strides = array<i32>} : memref<1x3x8xf32, #tpu.memory_space<vmem>>, vector<1x1x8xf32>,
    %c0_187 = arith.constant 0 : index
    %c2_188 = arith.constant 2 : index
    %c0_189 = arith.constant 0 : index
    %349 = vector.load %arg13[%c0_187, %c2_188, %c0_189] : memref<1x3x8xf32, #tpu.memory_space<vmem>>, vector<1x1x8xf32>
    %350 = vector.shape_cast %349 : vector<1x1x8xf32> to vector<1x8xf32>
    %351 = vector.shape_cast %324 : vector<1x8xf32> to vector<1x1x8xf32>
    tpu.vector_store %arg13[%c0_187, %c2_188, %c0_189], %351 {strides = array<i32>} : memref<1x3x8xf32, #tpu.memory_space<vmem>>, vector<1x1x8xf32>,
    return
  }
  func.func @transform_0(%arg0: i32, %arg1: memref<2xi32, #tpu.memory_space<smem>>) -> (i32, i32, i32) {
    %c0_i32 = arith.constant 0 : i32
    %c0_i32_0 = arith.constant 0 : i32
    %c0_i32_1 = arith.constant 0 : i32
    return %arg0, %c0_i32, %c0_i32_0 : i32, i32, i32
  }
  func.func @transform_1(%arg0: i32, %arg1: memref<2xi32, #tpu.memory_space<smem>>) -> (i32, i32, i32) {
    %c0_i32 = arith.constant 0 : i32
    %c0_i32_0 = arith.constant 0 : i32
    %c0_i32_1 = arith.constant 0 : i32
    %c0_i32_2 = arith.constant 0 : i32
    return %c0_i32, %c0_i32_0, %c0_i32_1 : i32, i32, i32
  }
  func.func @transform_2(%arg0: i32, %arg1: memref<2xi32, #tpu.memory_space<smem>>) -> (i32, i32, i32) {
    %c0_i32 = arith.constant 0 : i32
    %c0_i32_0 = arith.constant 0 : i32
    %c0_i32_1 = arith.constant 0 : i32
    %c0_i32_2 = arith.constant 0 : i32
    return %c0_i32, %c0_i32_0, %c0_i32_1 : i32, i32, i32
  }
  func.func @transform_3(%arg0: i32, %arg1: memref<2xi32, #tpu.memory_space<smem>>) -> (i32, i32, i32) {
    %c0_i32 = arith.constant 0 : i32
    %c0_i32_0 = arith.constant 0 : i32
    %c0_i32_1 = arith.constant 0 : i32
    %c0_i32_2 = arith.constant 0 : i32
    return %c0_i32, %c0_i32_0, %c0_i32_1 : i32, i32, i32
  }
  func.func @transform_4(%arg0: i32, %arg1: memref<2xi32, #tpu.memory_space<smem>>) -> (i32, i32, i32) {
    %c0_i32 = arith.constant 0 : i32
    %c0_i32_0 = arith.constant 0 : i32
    %c0_i32_1 = arith.constant 0 : i32
    %c0_i32_2 = arith.constant 0 : i32
    return %c0_i32, %c0_i32_0, %c0_i32_1 : i32, i32, i32
  }
  func.func @transform_5(%arg0: i32, %arg1: memref<2xi32, #tpu.memory_space<smem>>) -> (i32, i32, i32) {
    %c0_i32 = arith.constant 0 : i32
    %c0_i32_0 = arith.constant 0 : i32
    %c0_i32_1 = arith.constant 0 : i32
    %c0_i32_2 = arith.constant 0 : i32
    return %c0_i32, %c0_i32_0, %c0_i32_1 : i32, i32, i32
  }
  func.func @transform_6(%arg0: i32, %arg1: memref<2xi32, #tpu.memory_space<smem>>) -> (i32, i32) {
    %c0_i32 = arith.constant 0 : i32
    %c0_i32_0 = arith.constant 0 : i32
    %c0_i32_1 = arith.constant 0 : i32
    return %c0_i32, %c0_i32_0 : i32, i32
  }
  func.func @transform_7(%arg0: i32, %arg1: memref<2xi32, #tpu.memory_space<smem>>) -> (i32, i32) {
    %c0_i32 = arith.constant 0 : i32
    %c0_i32_0 = arith.constant 0 : i32
    %c0_i32_1 = arith.constant 0 : i32
    return %c0_i32, %c0_i32_0 : i32, i32
  }
  func.func @transform_8(%arg0: i32, %arg1: memref<2xi32, #tpu.memory_space<smem>>) -> (i32, i32) {
    %c0_i32 = arith.constant 0 : i32
    %c0_i32_0 = arith.constant 0 : i32
    %c0_i32_1 = arith.constant 0 : i32
    return %c0_i32, %c0_i32_0 : i32, i32
  }
  func.func @transform_9(%arg0: i32, %arg1: memref<2xi32, #tpu.memory_space<smem>>) -> (i32, i32) {
    %c0_i32 = arith.constant 0 : i32
    %c0_i32_0 = arith.constant 0 : i32
    %c0_i32_1 = arith.constant 0 : i32
    return %c0_i32, %c0_i32_0 : i32, i32
  }
  func.func @transform_10(%arg0: i32, %arg1: memref<2xi32, #tpu.memory_space<smem>>) -> (i32, i32, i32) {
    %c0_i32 = arith.constant 0 : i32
    %c0_i32_0 = arith.constant 0 : i32
    %c0_i32_1 = arith.constant 0 : i32
    return %arg0, %c0_i32, %c0_i32_0 : i32, i32, i32
  }
  func.func @transform_11(%arg0: i32, %arg1: memref<2xi32, #tpu.memory_space<smem>>) -> (i32, i32, i32) {
    %c0_i32 = arith.constant 0 : i32
    %c0_i32_0 = arith.constant 0 : i32
    %c0_i32_1 = arith.constant 0 : i32
    return %arg0, %c0_i32, %c0_i32_0 : i32, i32, i32
  }
}

</mosaic_0001>

<llo_original>
// kernel: tpu_custom_call.1
$region0: #{tpu_custom_call.1}
  #allocation0 [shape = 'u32[]', space=smem, size = 0x4, offset = 0x4, fixed_abs, tag = 'smem constant byte address 0x4 - core index']
  #allocation1 [shape = 'u32[144,128]{1,0:T(1,128)}', space=vmem, size = 0x12000, scoped, tag = 'internal scratch']
  #allocation2 [shape = 'f32[10,32]{1,0:T(8,128)}', space=vmem, size = 0x2000, scoped, tag = 'scratch operand']
  #allocation3 [shape = 's32[1]{0}', space=sflag, size = 0x4, scoped, tag = 'scoped memory for tpu_custom_call.1']
  #allocation4 [shape = 'u8[512]{0}', space=smem, size = 0x200, scoped, tag = 'prefetched SMEM operand 0']
  %s0 = inlined_call_operand.vmem [shape: s32[2], index: 0, kind: input, shape index: {}]
  %s1 = inlined_call_operand.vmem [shape: f32[2,8,32], index: 1, kind: input, shape index: {}]
  %s2 = inlined_call_operand.vmem [shape: bf16[3,96,32], index: 2, kind: input, shape index: {}]
  %s3 = inlined_call_operand.vmem [shape: f32[3,4,32], index: 3, kind: input, shape index: {}]
  %s4 = inlined_call_operand.vmem [shape: bf16[3,96,32], index: 4, kind: input, shape index: {}]
  %s5 = inlined_call_operand.vmem [shape: f32[3,3,32], index: 5, kind: input, shape index: {}]
  %s6 = inlined_call_operand.vmem [shape: f32[3,1,1], index: 6, kind: input, shape index: {}]
  %s7 = inlined_call_operand.vmem [shape: f32[1,15], index: 7, kind: input, shape index: {}]
  %s8 = inlined_call_operand.vmem [shape: f32[1,15], index: 8, kind: input, shape index: {}]
  %s9 = inlined_call_operand.vmem [shape: f32[16,32], index: 9, kind: input, shape index: {}]
  %s10 = inlined_call_operand.vmem [shape: f32[16,32], index: 10, kind: input, shape index: {}]
  %s11 = inlined_call_operand.hbm [shape: f32[2,8,32], index: 11, kind: output, shape index: {0}]
  %s12 = inlined_call_operand.vmem [shape: f32[2,3,8], index: 12, kind: output, shape index: {1}]
  %13 = xla_tuple %s11, %s12
  %s14 = sld [smem:[#allocation0]]
  $region81: #{tpu_custom_call.1} parent=0
    _
  %s16 = ssub.s32 1, %s14
  %s17 = scalar_select 0, %s16, %s14
  %s18 = sshll.u32 %s0, 4
  %s19 = int_to_ptr.vmem [resolvable:$true] %s18
  %21 = dma.vmem_to_smem %s19, 16, [#allocation4], [#allocation3]
  %22 = dma.done [#allocation3], 16
  %23 = sfence
  $region1: #{tpu_custom_call.1} parent=0
    #allocation5 [shape = 'u8[8192]{0}', space=vmem, size = 0x2000, scoped, tag = 'output window, operand 0']
    #allocation6 [shape = 's32[2]{0}', space=sflag, size = 0x8, scoped, tag = 'scoped memory for tpu_custom_call.1']
    %24 = vsyncpa [#allocation6], 0
    %s25 = scalar_lea.sflag [#allocation6], 1
    %26 = vsyncpa %s25, 0
    loop: start=0, step=1, limit=4
    $region2: #{tpu_custom_call.1} parent=1 // loop_pre_header
      _
    $region3: #{tpu_custom_call.1} parent=1 // loop_header
      %s28 = sphi 0, %s32
      %p29 = scmp.ge.s32.totalorder %s28, 4
      %s38 = sphi 0, %s40
      %s41 = sphi 0, %s38
      %s42 = sphi 0, %s41
      %s58 = sphi 0, %s42
      %s62 = sphi 0, %s62
      %s64 = sphi 0, %s62
      %s65 = sphi 0, %s64
      %s79 = sphi 0, %s65
      %s83 = sphi 0, %s83
      %s85 = sphi 0, %s83
      %s86 = sphi 0, %s85
      %s100 = sphi 0, %s86
      %s104 = sphi 0, %s104
      %s106 = sphi 0, %s104
      %s107 = sphi 0, %s106
      %s121 = sphi 0, %s107
      %s125 = sphi 0, %s125
      %s127 = sphi 0, %s125
      %s128 = sphi 0, %s127
      %s142 = sphi 0, %s128
      %s146 = sphi 0, %s146
      %s148 = sphi 0, %s146
      %s149 = sphi 0, %s148
      %s163 = sphi 0, %s149
      %s167 = sphi 0, %s167
      %s169 = sphi 0, %s167
      %s170 = sphi 0, %s169
      %s184 = sphi 0, %s170
      %s188 = sphi 0, %s188
      %s190 = sphi 0, %s188
      %s191 = sphi 0, %s190
      %s205 = sphi 0, %s191
      %s209 = sphi 0, %s209
      %s211 = sphi 0, %s209
      %s212 = sphi 0, %s211
      %s226 = sphi 0, %s212
      %s230 = sphi 0, %s230
      %s232 = sphi 0, %s230
      %s233 = sphi 0, %s232
      %s247 = sphi 0, %s233
      %s253 = sphi 0, %s255
      %s256 = sphi 0, %s253
      %s257 = sphi 0, %s256
      %s273 = sphi 0, %s257
      %s279 = sphi 0, %s281
      %s282 = sphi 0, %s279
      %s283 = sphi 0, %s282
      %s299 = sphi 0, %s283
    $region4: #{tpu_custom_call.1} parent=1 // loop_header_branch
      %31 = sbr.rel (%p29) target = $region8
    $region5: #{tpu_custom_call.1} parent=1 // loop_body
      %s33 = ssub.s32 %s28, 1
      %s34 = ssub.s32 %s28, 2
      %s35 = sadd.s32 %s28, 1
      %s36 = ssub.s32 %s28, %s35
      %p37 = scmp.eq.s32.totalorder %s36, 0
      %s39 = sadd.s32 %s38, 1
      %s40 = scalar_select %p37, %s38, %s39
      %p43 = pneg %p37
      %p44 = scmp.eq.s32.totalorder %s28, 1
      %p45 = por %p43, %p44
      %p46 = scmp.ne.s32.totalorder %s38, %s41
      %p47 = scmp.eq.s32.totalorder %s28, 0
      %p48 = por %p46, %p47
      %p49 = scmp.ne.s32.totalorder %s38, %s41
      %p50 = scmp.eq.s32.totalorder %s33, 1
      %p51 = por %p49, %p50
      %p52 = scmp.ne.s32.totalorder %s41, %s42
      %p53 = scmp.eq.s32.totalorder %s33, 0
      %p54 = por %p52, %p53
      %p55 = scmp.ne.s32.totalorder %s41, %s42
      %p56 = scmp.eq.s32.totalorder %s34, 1
      %p57 = por %p55, %p56
      %p59 = scmp.ne.s32.totalorder %s42, %s58
      %p60 = scmp.eq.s32.totalorder %s34, 0
      %p61 = por %p59, %p60
      %s63 = sadd.s32 %s62, 1
      %p66 = scmp.eq.s32.totalorder %s28, 1
      %p67 = scmp.ne.s32.totalorder %s62, %s64
      %p68 = scmp.eq.s32.totalorder %s28, 0
      %p69 = por %p67, %p68
      %p70 = scmp.ne.s32.totalorder %s62, %s64
      %p71 = scmp.eq.s32.totalorder %s33, 1
      %p72 = por %p70, %p71
      %p73 = scmp.ne.s32.totalorder %s64, %s65
      %p74 = scmp.eq.s32.totalorder %s33, 0
      %p75 = por %p73, %p74
      %p76 = scmp.ne.s32.totalorder %s64, %s65
      %p77 = scmp.eq.s32.totalorder %s34, 1
      %p78 = por %p76, %p77
      %p80 = scmp.ne.s32.totalorder %s65, %s79
      %p81 = scmp.eq.s32.totalorder %s34, 0
      %p82 = por %p80, %p81
      %s84 = sadd.s32 %s83, 1
      %p87 = scmp.eq.s32.totalorder %s28, 1
      %p88 = scmp.ne.s32.totalorder %s83, %s85
      %p89 = scmp.eq.s32.totalorder %s28, 0
      %p90 = por %p88, %p89
      %p91 = scmp.ne.s32.totalorder %s83, %s85
      %p92 = scmp.eq.s32.totalorder %s33, 1
      %p93 = por %p91, %p92
      %p94 = scmp.ne.s32.totalorder %s85, %s86
      %p95 = scmp.eq.s32.totalorder %s33, 0
      %p96 = por %p94, %p95
      %p97 = scmp.ne.s32.totalorder %s85, %s86
      %p98 = scmp.eq.s32.totalorder %s34, 1
      %p99 = por %p97, %p98
      %p101 = scmp.ne.s32.totalorder %s86, %s100
      %p102 = scmp.eq.s32.totalorder %s34, 0
      %p103 = por %p101, %p102
      %s105 = sadd.s32 %s104, 1
      %p108 = scmp.eq.s32.totalorder %s28, 1
      %p109 = scmp.ne.s32.totalorder %s104, %s106
      %p110 = scmp.eq.s32.totalorder %s28, 0
      %p111 = por %p109, %p110
      %p112 = scmp.ne.s32.totalorder %s104, %s106
      %p113 = scmp.eq.s32.totalorder %s33, 1
      %p114 = por %p112, %p113
      %p115 = scmp.ne.s32.totalorder %s106, %s107
      %p116 = scmp.eq.s32.totalorder %s33, 0
      %p117 = por %p115, %p116
      %p118 = scmp.ne.s32.totalorder %s106, %s107
      %p119 = scmp.eq.s32.totalorder %s34, 1
      %p120 = por %p118, %p119
      %p122 = scmp.ne.s32.totalorder %s107, %s121
      %p123 = scmp.eq.s32.totalorder %s34, 0
      %p124 = por %p122, %p123
      %s126 = sadd.s32 %s125, 1
      %p129 = scmp.eq.s32.totalorder %s28, 1
      %p130 = scmp.ne.s32.totalorder %s125, %s127
      %p131 = scmp.eq.s32.totalorder %s28, 0
      %p132 = por %p130, %p131
      %p133 = scmp.ne.s32.totalorder %s125, %s127
      %p134 = scmp.eq.s32.totalorder %s33, 1
      %p135 = por %p133, %p134
      %p136 = scmp.ne.s32.totalorder %s127, %s128
      %p137 = scmp.eq.s32.totalorder %s33, 0
      %p138 = por %p136, %p137
      %p139 = scmp.ne.s32.totalorder %s127, %s128
      %p140 = scmp.eq.s32.totalorder %s34, 1
      %p141 = por %p139, %p140
      %p143 = scmp.ne.s32.totalorder %s128, %s142
      %p144 = scmp.eq.s32.totalorder %s34, 0
      %p145 = por %p143, %p144
      %s147 = sadd.s32 %s146, 1
      %p150 = scmp.eq.s32.totalorder %s28, 1
      %p151 = scmp.ne.s32.totalorder %s146, %s148
      %p152 = scmp.eq.s32.totalorder %s28, 0
      %p153 = por %p151, %p152
      %p154 = scmp.ne.s32.totalorder %s146, %s148
      %p155 = scmp.eq.s32.totalorder %s33, 1
      %p156 = por %p154, %p155
      %p157 = scmp.ne.s32.totalorder %s148, %s149
      %p158 = scmp.eq.s32.totalorder %s33, 0
      %p159 = por %p157, %p158
      %p160 = scmp.ne.s32.totalorder %s148, %s149
      %p161 = scmp.eq.s32.totalorder %s34, 1
      %p162 = por %p160, %p161
      %p164 = scmp.ne.s32.totalorder %s149, %s163
      %p165 = scmp.eq.s32.totalorder %s34, 0
      %p166 = por %p164, %p165
      %s168 = sadd.s32 %s167, 1
      %p171 = scmp.eq.s32.totalorder %s28, 1
      %p172 = scmp.ne.s32.totalorder %s167, %s169
      %p173 = scmp.eq.s32.totalorder %s28, 0
      %p174 = por %p172, %p173
      %p175 = scmp.ne.s32.totalorder %s167, %s169
      %p176 = scmp.eq.s32.totalorder %s33, 1
      %p177 = por %p175, %p176
      %p178 = scmp.ne.s32.totalorder %s169, %s170
      %p179 = scmp.eq.s32.totalorder %s33, 0
      %p180 = por %p178, %p179
      %p181 = scmp.ne.s32.totalorder %s169, %s170
      %p182 = scmp.eq.s32.totalorder %s34, 1
      %p183 = por %p181, %p182
      %p185 = scmp.ne.s32.totalorder %s170, %s184
      %p186 = scmp.eq.s32.totalorder %s34, 0
      %p187 = por %p185, %p186
      %s189 = sadd.s32 %s188, 1
      %p192 = scmp.eq.s32.totalorder %s28, 1
      %p193 = scmp.ne.s32.totalorder %s188, %s190
      %p194 = scmp.eq.s32.totalorder %s28, 0
      %p195 = por %p193, %p194
      %p196 = scmp.ne.s32.totalorder %s188, %s190
      %p197 = scmp.eq.s32.totalorder %s33, 1
      %p198 = por %p196, %p197
      %p199 = scmp.ne.s32.totalorder %s190, %s191
      %p200 = scmp.eq.s32.totalorder %s33, 0
      %p201 = por %p199, %p200
      %p202 = scmp.ne.s32.totalorder %s190, %s191
      %p203 = scmp.eq.s32.totalorder %s34, 1
      %p204 = por %p202, %p203
      %p206 = scmp.ne.s32.totalorder %s191, %s205
      %p207 = scmp.eq.s32.totalorder %s34, 0
      %p208 = por %p206, %p207
      %s210 = sadd.s32 %s209, 1
      %p213 = scmp.eq.s32.totalorder %s28, 1
      %p214 = scmp.ne.s32.totalorder %s209, %s211
      %p215 = scmp.eq.s32.totalorder %s28, 0
      %p216 = por %p214, %p215
      %p217 = scmp.ne.s32.totalorder %s209, %s211
      %p218 = scmp.eq.s32.totalorder %s33, 1
      %p219 = por %p217, %p218
      %p220 = scmp.ne.s32.totalorder %s211, %s212
      %p221 = scmp.eq.s32.totalorder %s33, 0
      %p222 = por %p220, %p221
      %p223 = scmp.ne.s32.totalorder %s211, %s212
      %p224 = scmp.eq.s32.totalorder %s34, 1
      %p225 = por %p223, %p224
      %p227 = scmp.ne.s32.totalorder %s212, %s226
      %p228 = scmp.eq.s32.totalorder %s34, 0
      %p229 = por %p227, %p228
      %s231 = sadd.s32 %s230, 1
      %p234 = scmp.eq.s32.totalorder %s28, 1
      %p235 = scmp.ne.s32.totalorder %s230, %s232
      %p236 = scmp.eq.s32.totalorder %s28, 0
      %p237 = por %p235, %p236
      %p238 = scmp.ne.s32.totalorder %s230, %s232
      %p239 = scmp.eq.s32.totalorder %s33, 1
      %p240 = por %p238, %p239
      %p241 = scmp.ne.s32.totalorder %s232, %s233
      %p242 = scmp.eq.s32.totalorder %s33, 0
      %p243 = por %p241, %p242
      %p244 = scmp.ne.s32.totalorder %s232, %s233
      %p245 = scmp.eq.s32.totalorder %s34, 1
      %p246 = por %p244, %p245
      %p248 = scmp.ne.s32.totalorder %s233, %s247
      %p249 = scmp.eq.s32.totalorder %s34, 0
      %p250 = por %p248, %p249
      %s251 = ssub.s32 %s28, %s35
      %p252 = scmp.eq.s32.totalorder %s251, 0
      %s254 = sadd.s32 %s253, 1
      %s255 = scalar_select %p252, %s253, %s254
      %p258 = pneg %p252
      %p259 = scmp.eq.s32.totalorder %s28, 1
      %p260 = por %p258, %p259
      %p261 = scmp.ne.s32.totalorder %s253, %s256
      %p262 = scmp.eq.s32.totalorder %s28, 0
      %p263 = por %p261, %p262
      %p264 = scmp.ne.s32.totalorder %s253, %s256
      %p265 = scmp.eq.s32.totalorder %s33, 1
      %p266 = por %p264, %p265
      %p267 = scmp.ne.s32.totalorder %s256, %s257
      %p268 = scmp.eq.s32.totalorder %s33, 0
      %p269 = por %p267, %p268
      %p270 = scmp.ne.s32.totalorder %s256, %s257
      %p271 = scmp.eq.s32.totalorder %s34, 1
      %p272 = por %p270, %p271
      %p274 = scmp.ne.s32.totalorder %s257, %s273
      %p275 = scmp.eq.s32.totalorder %s34, 0
      %p276 = por %p274, %p275
      %s277 = ssub.s32 %s28, %s35
      %p278 = scmp.eq.s32.totalorder %s277, 0
      %s280 = sadd.s32 %s279, 1
      %s281 = scalar_select %p278, %s279, %s280
      %p284 = pneg %p278
      %p285 = scmp.eq.s32.totalorder %s28, 1
      %p286 = por %p284, %p285
      %p287 = scmp.ne.s32.totalorder %s279, %s282
      %p288 = scmp.eq.s32.totalorder %s28, 0
      %p289 = por %p287, %p288
      %p290 = scmp.ne.s32.totalorder %s279, %s282
      %p291 = scmp.eq.s32.totalorder %s33, 1
      %p292 = por %p290, %p291
      %p293 = scmp.ne.s32.totalorder %s282, %s283
      %p294 = scmp.eq.s32.totalorder %s33, 0
      %p295 = por %p293, %p294
      %p296 = scmp.ne.s32.totalorder %s282, %s283
      %p297 = scmp.eq.s32.totalorder %s34, 1
      %p298 = por %p296, %p297
      %p300 = scmp.ne.s32.totalorder %s283, %s299
      %p301 = scmp.eq.s32.totalorder %s34, 0
      %p302 = por %p300, %p301
      %p303 = scmp.le.s32.totalorder 1, %s28
      %p304 = scmp.lt.s32.totalorder %s28, 3
      %p305 = pnand %p303, %p304
      %p306 = pneg %p305
      // Predicated region
      $region9: #{tpu_custom_call.1} parent=5 // pred_check
        _
      $region10: #{tpu_custom_call.1} parent=5 // pred_check_branch
        %308 = sbr.rel (%p305) target = $region12
      $region11: #{tpu_custom_call.1} parent=5 // pred_region
        %s309 = ssub.s32 %s28, 1
        // Predicated region
        $region13: #{tpu_custom_call.1} parent=11 // pred_check
          %p310 = pneg %p75
        $region14: #{tpu_custom_call.1} parent=11 // pred_check_branch
          %312 = sbr.rel (%p310) target = $region16
        $region15: #{tpu_custom_call.1} parent=11 // pred_region
          _
        $region16: #{tpu_custom_call.1} parent=11 // pred_fallthru
          _
        // Predicated region
        $region17: #{tpu_custom_call.1} parent=11 // pred_check
          %p313 = pneg %p96
        $region18: #{tpu_custom_call.1} parent=11 // pred_check_branch
          %315 = sbr.rel (%p313) target = $region20
        $region19: #{tpu_custom_call.1} parent=11 // pred_region
          _
        $region20: #{tpu_custom_call.1} parent=11 // pred_fallthru
          _
        // Predicated region
        $region21: #{tpu_custom_call.1} parent=11 // pred_check
          %p316 = pneg %p117
        $region22: #{tpu_custom_call.1} parent=11 // pred_check_branch
          %318 = sbr.rel (%p316) target = $region24
        $region23: #{tpu_custom_call.1} parent=11 // pred_region
          _
        $region24: #{tpu_custom_call.1} parent=11 // pred_fallthru
          _
        // Predicated region
        $region25: #{tpu_custom_call.1} parent=11 // pred_check
          %p319 = pneg %p138
        $region26: #{tpu_custom_call.1} parent=11 // pred_check_branch
          %321 = sbr.rel (%p319) target = $region28
        $region27: #{tpu_custom_call.1} parent=11 // pred_region
          _
        $region28: #{tpu_custom_call.1} parent=11 // pred_fallthru
          _
        // Predicated region
        $region29: #{tpu_custom_call.1} parent=11 // pred_check
          %p322 = pneg %p159
        $region30: #{tpu_custom_call.1} parent=11 // pred_check_branch
          %324 = sbr.rel (%p322) target = $region32
        $region31: #{tpu_custom_call.1} parent=11 // pred_region
          _
        $region32: #{tpu_custom_call.1} parent=11 // pred_fallthru
          _
        // Predicated region
        $region33: #{tpu_custom_call.1} parent=11 // pred_check
          %p325 = pneg %p180
        $region34: #{tpu_custom_call.1} parent=11 // pred_check_branch
          %327 = sbr.rel (%p325) target = $region36
        $region35: #{tpu_custom_call.1} parent=11 // pred_region
          _
        $region36: #{tpu_custom_call.1} parent=11 // pred_fallthru
          _
        // Predicated region
        $region37: #{tpu_custom_call.1} parent=11 // pred_check
          %p328 = pneg %p201
        $region38: #{tpu_custom_call.1} parent=11 // pred_check_branch
          %330 = sbr.rel (%p328) target = $region40
        $region39: #{tpu_custom_call.1} parent=11 // pred_region
          _
        $region40: #{tpu_custom_call.1} parent=11 // pred_fallthru
          _
        // Predicated region
        $region41: #{tpu_custom_call.1} parent=11 // pred_check
          %p331 = pneg %p222
        $region42: #{tpu_custom_call.1} parent=11 // pred_check_branch
          %333 = sbr.rel (%p331) target = $region44
        $region43: #{tpu_custom_call.1} parent=11 // pred_region
          _
        $region44: #{tpu_custom_call.1} parent=11 // pred_fallthru
          _
        // Predicated region
        $region45: #{tpu_custom_call.1} parent=11 // pred_check
          %p334 = pneg %p243
        $region46: #{tpu_custom_call.1} parent=11 // pred_check_branch
          %336 = sbr.rel (%p334) target = $region48
        $region47: #{tpu_custom_call.1} parent=11 // pred_region
          _
        $region48: #{tpu_custom_call.1} parent=11 // pred_fallthru
          _
      $region12: #{tpu_custom_call.1} parent=5 // pred_fallthru
        _
      %p337 = scmp.lt.s32.totalorder %s28, 2
      // Predicated region
      $region49: #{tpu_custom_call.1} parent=5 // pred_check
        %p338 = pneg %p337
      $region50: #{tpu_custom_call.1} parent=5 // pred_check_branch
        %340 = sbr.rel (%p338) target = $region52
      $region51: #{tpu_custom_call.1} parent=5 // pred_region
        // Predicated region
        $region53: #{tpu_custom_call.1} parent=51 // pred_check
          %p341 = pneg %p48
        $region54: #{tpu_custom_call.1} parent=51 // pred_check_branch
          %343 = sbr.rel (%p341) target = $region56
        $region55: #{tpu_custom_call.1} parent=51 // pred_region
          %p344 = scmp.lt.s32.totalorder %s28, 1
          %s345 = scalar_select %p344, %s28, 1
          %s346 = smul.addr %s345, 8
          %s347 = scalar_lea.vmem %s1, %s346
        $region56: #{tpu_custom_call.1} parent=51 // pred_fallthru
          _
      $region52: #{tpu_custom_call.1} parent=5 // pred_fallthru
        _
      %p348 = scmp.le.s32.totalorder 1, %s28
      %p349 = scmp.lt.s32.totalorder %s28, 3
      %p350 = pnand %p348, %p349
      %p351 = pneg %p350
      // Predicated region
      $region57: #{tpu_custom_call.1} parent=5 // pred_check
        _
      $region58: #{tpu_custom_call.1} parent=5 // pred_check_branch
        %353 = sbr.rel (%p350) target = $region60
      $region59: #{tpu_custom_call.1} parent=5 // pred_region
        %s354 = ssub.s32 %s28, 1
        %p355 = scmp.lt.s32.totalorder %s33, 1
        %s356 = scalar_select %p355, %s33, 1
        %s357 = smul.addr %s356, 8
        %s358 = scalar_lea.vmem %s1, %s357
        %p359 = pneg %p54
        %p360 = pneg %p51
        %p361 = pneg %p75
        %p362 = pneg %p72
        %p363 = pneg %p96
        %p364 = pneg %p93
        %p365 = pneg %p117
        %p366 = pneg %p114
        %p367 = pneg %p138
        %p368 = pneg %p135
        %p369 = pneg %p159
        %p370 = pneg %p156
        %p371 = pneg %p180
        %p372 = pneg %p177
        %p373 = pneg %p201
        %p374 = pneg %p198
        %p375 = pneg %p222
        %p376 = pneg %p219
        %p377 = pneg %p243
        %p378 = pneg %p240
        %p379 = pneg %p269
        %p380 = pneg %p266
        %s381 = sand.u32 %s256, 1
        %s382 = scalar_lea.sflag [#allocation6], %s381
        %s383 = sand.u32 %s256, 1
        %s384 = smul.addr %s383, 8
        %s385 = scalar_lea.vmem [#allocation5], %s384
        %p386 = pneg %p295
        %p387 = pneg %p292
        %p388 = scmp.lt.s32.totalorder %s33, 1
        %s389 = scalar_select %p388, %s33, 1
        %s390 = smul.addr %s389, 4
        %s391 = scalar_lea.vmem %s12, %s390
        %p392 = scmp.lt.s32.totalorder %s33, 1
        %s393 = scalar_select %p392, %s33, 1
        %s394 = smul.addr %s393, 8
        %s395 = scalar_lea.vmem %s1, %s394
        %p396 = scmp.lt.s32.totalorder %s33, 1
        %s397 = scalar_select %p396, %s33, 1
        %s398 = smul.addr %s397, 4
        %s399 = scalar_lea.vmem %s12, %s398
        %s401 = sld [smem:[#allocation4 + %s33]]
        %v402 = vld [vmem:[%s395] sm:$0xff]
        %v403 = vlaneseq
        %v404 = vshrl.u32 %v403, 7
        %v405 = vstv %s401
        %vm406 = vcmp.ge.s32.totalorder %v404, %v405
        %v407 = vlaneseq
        %v408 = vand.u32 %v407, 127
        %vm409 = vcmp.ge.s32.totalorder %v408, %v405
        %v410 = vld [vmem:[%s2] sm:$0xf]
        %v411 = vld [vmem:[%s2 + $0x4] sm:$0xf]
        %v412 = vld [vmem:[%s2 + $0x8] sm:$0xf]
        %v413 = vld [vmem:[%s2 + $0xc] sm:$0xf]
        %v414 = vld [vmem:[%s2 + $0x10] sm:$0xf]
        %v415 = vld [vmem:[%s2 + $0x14] sm:$0xf]
        %v416 = vld [vmem:[%s2 + $0x18] sm:$0xf]
        %v417 = vld [vmem:[%s2 + $0x1c] sm:$0xf]
        %v418 = vld [vmem:[%s2 + $0x20] sm:$0xf]
        %v419 = vld [vmem:[%s2 + $0x24] sm:$0xf]
        %v420 = vld [vmem:[%s2 + $0x28] sm:$0xf]
        %v421 = vld [vmem:[%s2 + $0x2c] sm:$0xf]
        %v422 = vld [vmem:[%s3] sm:$0xf]
        %v423 = vld [vmem:[%s4] sm:$0xf]
        %v424 = vld [vmem:[%s4 + $0x4] sm:$0xf]
        %v425 = vld [vmem:[%s4 + $0x8] sm:$0xf]
        %v426 = vld [vmem:[%s4 + $0xc] sm:$0xf]
        %v427 = vld [vmem:[%s4 + $0x10] sm:$0xf]
        %v428 = vld [vmem:[%s4 + $0x14] sm:$0xf]
        %v429 = vld [vmem:[%s4 + $0x18] sm:$0xf]
        %v430 = vld [vmem:[%s4 + $0x1c] sm:$0xf]
        %v431 = vld [vmem:[%s4 + $0x20] sm:$0xf]
        %v432 = vld [vmem:[%s4 + $0x24] sm:$0xf]
        %v433 = vld [vmem:[%s4 + $0x28] sm:$0xf]
        %v434 = vld [vmem:[%s4 + $0x2c] sm:$0xf]
        %v435 = vld [vmem:[%s5] sm:$0x7]
        %v436 = vld [vmem:[%s6] sm:$0x1]
        %vm437 = vcmask 261120
        %438 = vst.msk [vmem:[#allocation2] sm:$0xff] %vm437, 0.0
        %vm439 = vcmask 254976
        %440 = vst.msk [vmem:[#allocation2 + $0x8] sm:$0x3] %vm439, 0.0
        %441 = vst.msk [vmem:[#allocation2 + $0x1] sm:$0xff] %vm437, %v402
        %v442 = vld [vmem:[#allocation2] sm:$0xff]
        %v443 = vld [vmem:[#allocation2 + $0x1] sm:$0xff]
        %v444 = vld [vmem:[#allocation2 + $0x2] sm:$0xff]
        %446 = vrot.lane.b32.xlu0 %v443, 32
        %v447 = vpop.permute.xlu0 %446
        %450 = vrot.lane.b32.xlu0 %v444, 64
        %v451 = vpop.permute.xlu0 %450
        %v453 = vsel %vm437, %v442, %v447
        %vm454 = vcmask 523264
        %v455 = vsel %vm454, %v453, %v451
        %v456 = vpack.c.bf16 %v455, %v455
        %v457 = vlaneseq
        %v458 = vshrl.u32 %v457, 7
        %v459 = vsub.s32 0, %v458
        %v460 = vrot.slane %v422, %v459
        %v473 = vunpack.c.l.b16 %v410
        %v474 = vunpack.c.l.b16 %v411
        %v475 = vunpack.c.l.b16 %v412
        %v476 = vunpack.c.l.b16 %v413
        %v477 = vunpack.c.l.b16 %v414
        %v478 = vunpack.c.l.b16 %v415
        %v479 = vunpack.c.l.b16 %v416
        %v480 = vunpack.c.l.b16 %v417
        %v481 = vunpack.c.l.b16 %v418
        %v482 = vunpack.c.l.b16 %v419
        %v483 = vunpack.c.l.b16 %v420
        %v484 = vunpack.c.l.b16 %v421
        %v485 = vpack.c.b16 %v474, %v473
        %v486 = vpack.c.b16 %v476, %v475
        %v487 = vpack.c.b16 %v478, %v477
        %v488 = vpack.c.b16 %v480, %v479
        %v489 = vpack.c.b16 %v482, %v481
        %v490 = vpack.c.b16 %v484, %v483
        %vm497 = vcmask 785408
        %v499 = vsel %vm497, %v456, 0
        %501 = vmatprep.subr.bf16.mxu0 0
        %502 = vmatpush1.bf16.msra.mxu0 %v485
        %503 = vmatprep.subr.bf16.mxu0 0
        %504 = vmatpush1.bf16.msra.mxu0 %v486
        %505 = vmatprep.subr.bf16.mxu0 0
        %506 = vmatpush1.bf16.msra.mxu0 %v487
        %507 = vmatprep.subr.bf16.mxu0 0
        %508 = vmatpush1.bf16.msra.mxu0 %v488
        %509 = vmatprep.subr.bf16.mxu0 0
        %510 = vmatpush1.bf16.msra.mxu0 %v489
        %511 = vmatprep.subr.bf16.mxu0 0
        %512 = vmatpush1.bf16.msra.mxu0 %v490
        %513 = vmatprep.subr.bf16.mxu0 0
        %514 = vmatpush1.bf16.msra.mxu0 0
        %515 = vmatprep.subr.bf16.mxu0 0
        %516 = vmatpush1.bf16.msra.mxu0 0
        %517 = vmatprep.subr.bf16.mxu0 0
        %518 = vmatpush1.bf16.msra.mxu0 0
        %519 = vmatprep.subr.bf16.mxu0 0
        %520 = vmatpush1.bf16.msra.mxu0 0
        %521 = vmatprep.subr.bf16.mxu0 0
        %522 = vmatpush1.bf16.msra.mxu0 0
        %523 = vmatprep.subr.bf16.mxu0 0
        %524 = vmatpush1.bf16.msra.mxu0 0
        %525 = vmatprep.subr.bf16.mxu0 0
        %526 = vmatpush1.bf16.msra.mxu0 0
        %527 = vmatprep.subr.bf16.mxu0 0
        %528 = vmatpush1.bf16.msra.mxu0 0
        %529 = vmatprep.subr.bf16.mxu0 0
        %530 = vmatpush1.bf16.msra.mxu0 0
        %531 = vmatprep.subr.bf16.mxu0 0
        %532 = vmatpush1.bf16.msra.mxu0 0
        %533 = vmatprep.mubr.bf16.mxu0 0
        %534 = vmatmul.mubr.bf16.gmra.mrb[0].mxu0 %v499
        %v535 = vpop.f32.mrb[0].mxu0
        %v536 = vadd.f32 %v460, %v535
        %v537 = vpop.f32.mrb[0].mxu0
        %v538 = vpop.f32.mrb[0].mxu0
        %v539 = vpop.f32.mrb[0].mxu0
        %540 = vdwg.mxu0
        %v541 = vmax.f32 %v536, 0.0
        %v542 = vsel %vm437, %v541, 0.0
        %543 = vadd.xlane.f32.xlu0 %v542
        %v544 = vpop.xlane.xlu0 %543
        %v545 = vrcp.pop 32.0
        %v546 = vmul.f32 %v544, %v545
        %v547 = vsub.f32 %v541, %v546
        %v548 = vmul.f32 %v547, %v547
        %v549 = vsel %vm437, %v548, 0.0
        %550 = vadd.xlane.f32.xlu0 %v549
        %v551 = vpop.xlane.xlu0 %550
        %v552 = vmul.f32 %v551, %v545
        %v553 = vadd.f32 %v552, 1e-05
        %v554 = vrsqrt.pop %v553
        %v555 = vmul.f32 %v547, %v554
        %v556 = vlaneseq
        %v557 = vshrl.u32 %v556, 7
        %v558 = vsub.s32 1, %v557
        %v559 = vrot.slane %v422, %v558
        %v560 = vmul.f32 %v555, %v559
        %v561 = vlaneseq
        %v562 = vshrl.u32 %v561, 7
        %v563 = vsub.s32 2, %v562
        %v564 = vrot.slane %v422, %v563
        %v565 = vadd.f32 %v560, %v564
        %566 = vst.msk [vmem:[#allocation2] sm:$0xff] %vm437, 0.0
        %567 = vst.msk [vmem:[#allocation2 + $0x8] sm:$0x3] %vm439, 0.0
        %568 = vst.msk [vmem:[#allocation2 + $0x1] sm:$0xff] %vm437, %v565
        %v569 = vld [vmem:[#allocation2] sm:$0xff]
        %v570 = vld [vmem:[#allocation2 + $0x1] sm:$0xff]
        %v571 = vld [vmem:[#allocation2 + $0x2] sm:$0xff]
        %573 = vrot.lane.b32.xlu0 %v570, 32
        %v574 = vpop.permute.xlu0 %573
        %577 = vrot.lane.b32.xlu0 %v571, 64
        %v578 = vpop.permute.xlu0 %577
        %v580 = vsel %vm437, %v569, %v574
        %v581 = vsel %vm454, %v580, %v578
        %v582 = vpack.c.bf16 %v581, %v581
        %v583 = vlaneseq
        %v584 = vshrl.u32 %v583, 7
        %v585 = vsub.s32 0, %v584
        %v586 = vrot.slane %v435, %v585
        %v599 = vunpack.c.l.b16 %v423
        %v600 = vunpack.c.l.b16 %v424
        %v601 = vunpack.c.l.b16 %v425
        %v602 = vunpack.c.l.b16 %v426
        %v603 = vunpack.c.l.b16 %v427
        %v604 = vunpack.c.l.b16 %v428
        %v605 = vunpack.c.l.b16 %v429
        %v606 = vunpack.c.l.b16 %v430
        %v607 = vunpack.c.l.b16 %v431
        %v608 = vunpack.c.l.b16 %v432
        %v609 = vunpack.c.l.b16 %v433
        %v610 = vunpack.c.l.b16 %v434
        %v611 = vpack.c.b16 %v600, %v599
        %v612 = vpack.c.b16 %v602, %v601
        %v613 = vpack.c.b16 %v604, %v603
        %v614 = vpack.c.b16 %v606, %v605
        %v615 = vpack.c.b16 %v608, %v607
        %v616 = vpack.c.b16 %v610, %v609
        %v624 = vsel %vm497, %v582, 0
        %626 = vmatprep.subr.bf16.mxu0 0
        %627 = vmatpush1.bf16.msra.mxu0 %v611
        %628 = vmatprep.subr.bf16.mxu0 0
        %629 = vmatpush1.bf16.msra.mxu0 %v612
        %630 = vmatprep.subr.bf16.mxu0 0
        %631 = vmatpush1.bf16.msra.mxu0 %v613
        %632 = vmatprep.subr.bf16.mxu0 0
        %633 = vmatpush1.bf16.msra.mxu0 %v614
        %634 = vmatprep.subr.bf16.mxu0 0
        %635 = vmatpush1.bf16.msra.mxu0 %v615
        %636 = vmatprep.subr.bf16.mxu0 0
        %637 = vmatpush1.bf16.msra.mxu0 %v616
        %638 = vmatprep.subr.bf16.mxu0 0
        %639 = vmatpush1.bf16.msra.mxu0 0
        %640 = vmatprep.subr.bf16.mxu0 0
        %641 = vmatpush1.bf16.msra.mxu0 0
        %642 = vmatprep.subr.bf16.mxu0 0
        %643 = vmatpush1.bf16.msra.mxu0 0
        %644 = vmatprep.subr.bf16.mxu0 0
        %645 = vmatpush1.bf16.msra.mxu0 0
        %646 = vmatprep.subr.bf16.mxu0 0
        %647 = vmatpush1.bf16.msra.mxu0 0
        %648 = vmatprep.subr.bf16.mxu0 0
        %649 = vmatpush1.bf16.msra.mxu0 0
        %650 = vmatprep.subr.bf16.mxu0 0
        %651 = vmatpush1.bf16.msra.mxu0 0
        %652 = vmatprep.subr.bf16.mxu0 0
        %653 = vmatpush1.bf16.msra.mxu0 0
        %654 = vmatprep.subr.bf16.mxu0 0
        %655 = vmatpush1.bf16.msra.mxu0 0
        %656 = vmatprep.subr.bf16.mxu0 0
        %657 = vmatpush1.bf16.msra.mxu0 0
        %658 = vmatprep.mubr.bf16.mxu0 0
        %659 = vmatmul.mubr.bf16.gmra.mrb[0].mxu0 %v624
        %v660 = vpop.f32.mrb[0].mxu0
        %v661 = vadd.f32 %v586, %v660
        %v662 = vpop.f32.mrb[0].mxu0
        %v663 = vpop.f32.mrb[0].mxu0
        %v664 = vpop.f32.mrb[0].mxu0
        %665 = vdwg.mxu0
        %v666 = vmax.f32 %v661, 0.0
        %v667 = vsel %vm437, %v666, 0.0
        %668 = vadd.xlane.f32.xlu0 %v667
        %v669 = vpop.xlane.xlu0 %668
        %v670 = vmul.f32 %v669, %v545
        %v671 = vsub.f32 %v666, %v670
        %v672 = vmul.f32 %v671, %v671
        %v673 = vsel %vm437, %v672, 0.0
        %674 = vadd.xlane.f32.xlu0 %v673
        %v675 = vpop.xlane.xlu0 %674
        %v676 = vmul.f32 %v675, %v545
        %v677 = vadd.f32 %v676, 1e-05
        %v678 = vrsqrt.pop %v677
        %v679 = vmul.f32 %v671, %v678
        %v680 = vlaneseq
        %v681 = vshrl.u32 %v680, 7
        %v682 = vsub.s32 1, %v681
        %v683 = vrot.slane %v435, %v682
        %v684 = vmul.f32 %v679, %v683
        %v685 = vlaneseq
        %v686 = vshrl.u32 %v685, 7
        %v687 = vsub.s32 2, %v686
        %v688 = vrot.slane %v435, %v687
        %v689 = vadd.f32 %v684, %v688
        %691 = vset.pattern.permute.xlu0 0
        %692 = vperm.xlu0 %691, %v436
        %v693 = vpop.permute.xlu0 %692
        %v695 = vlaneseq
        %v696 = vshrl.u32 %v695, 7
        %v697 = vsub.s32 0, %v696
        %v698 = vrot.slane %v693, %v697
        %v700 = vrot.slane %v422, 3
        %v701 = vsel %vm437, %v700, 0
        %v704 = vsel %vm437, %v689, 0
        %706 = vmatprep.subr.mxu0 0.0
        %707 = vmatpush1.xpose.msra.mxu0 %v704
        %708 = vmatprep.subr.mxu0 0.0
        %709 = vmatpush1.xpose.msra.mxu0 0.0
        %710 = vmatprep.subr.mxu0 0.0
        %711 = vmatpush1.xpose.msra.mxu0 0.0
        %712 = vmatprep.subr.mxu0 0.0
        %713 = vmatpush1.xpose.msra.mxu0 0.0
        %714 = vmatprep.subr.mxu0 0.0
        %715 = vmatpush1.xpose.msra.mxu0 0.0
        %716 = vmatprep.subr.mxu0 0.0
        %717 = vmatpush1.xpose.msra.mxu0 0.0
        %718 = vmatprep.subr.mxu0 0.0
        %719 = vmatpush1.xpose.msra.mxu0 0.0
        %720 = vmatprep.subr.mxu0 0.0
        %721 = vmatpush1.xpose.msra.mxu0 0.0
        %722 = vmatprep.subr.mxu0 0.0
        %723 = vmatpush1.xpose.msra.mxu0 0.0
        %724 = vmatprep.subr.mxu0 0.0
        %725 = vmatpush1.xpose.msra.mxu0 0.0
        %726 = vmatprep.subr.mxu0 0.0
        %727 = vmatpush1.xpose.msra.mxu0 0.0
        %728 = vmatprep.subr.mxu0 0.0
        %729 = vmatpush1.xpose.msra.mxu0 0.0
        %730 = vmatprep.subr.mxu0 0.0
        %731 = vmatpush1.xpose.msra.mxu0 0.0
        %732 = vmatprep.subr.mxu0 0.0
        %733 = vmatpush1.xpose.msra.mxu0 0.0
        %734 = vmatprep.subr.mxu0 0.0
        %735 = vmatpush1.xpose.msra.mxu0 0.0
        %736 = vmatprep.subr.mxu0 0.0
        %737 = vmatpush1.xpose.msra.mxu0 0.0
        %738 = vmatprep.subr.mxu0 0.0
        %739 = vmatpush1.xpose.msra.mxu0 0.0
        %740 = vmatprep.subr.mxu0 0.0
        %741 = vmatpush1.xpose.msra.mxu0 0.0
        %742 = vmatprep.subr.mxu0 0.0
        %743 = vmatpush1.xpose.msra.mxu0 0.0
        %744 = vmatprep.subr.mxu0 0.0
        %745 = vmatpush1.xpose.msra.mxu0 0.0
        %746 = vmatprep.subr.mxu0 0.0
        %747 = vmatpush1.xpose.msra.mxu0 0.0
        %748 = vmatprep.subr.mxu0 0.0
        %749 = vmatpush1.xpose.msra.mxu0 0.0
        %750 = vmatprep.subr.mxu0 0.0
        %751 = vmatpush1.xpose.msra.mxu0 0.0
        %752 = vmatprep.subr.mxu0 0.0
        %753 = vmatpush1.xpose.msra.mxu0 0.0
        %754 = vmatprep.subr.mxu0 0.0
        %755 = vmatpush1.xpose.msra.mxu0 0.0
        %756 = vmatprep.subr.mxu0 0.0
        %757 = vmatpush1.xpose.msra.mxu0 0.0
        %758 = vmatprep.subr.mxu0 0.0
        %759 = vmatpush1.xpose.msra.mxu0 0.0
        %760 = vmatprep.subr.mxu0 0.0
        %761 = vmatpush1.xpose.msra.mxu0 0.0
        %762 = vmatprep.subr.mxu0 0.0
        %763 = vmatpush1.xpose.msra.mxu0 0.0
        %764 = vmatprep.subr.mxu0 0.0
        %765 = vmatpush1.xpose.msra.mxu0 0.0
        %766 = vmatprep.subr.mxu0 0.0
        %767 = vmatpush1.xpose.msra.mxu0 0.0
        %768 = vmatprep.subr.mxu0 0.0
        %769 = vmatpush1.xpose.msra.mxu0 0.0
        %770 = vmatprep.mubr.f32.mxu0 0.0
        %771 = vmatmul.mubr.f32.gmra.mrb[0].mxu0 %v701
        %v772 = vpop.f32.mrb[0].mxu0
        %v773 = vadd.f32 %v698, %v772
        %v774 = vpop.f32.mrb[0].mxu0
        %775 = vdwg.mxu0
        %v776 = vsel %vm409, 0.0, %v773
        %s777 = scalar_lea.vmem %s2, 48
        %v778 = vld [vmem:[%s777] sm:$0xf]
        %v779 = vld [vmem:[%s777 + $0x4] sm:$0xf]
        %v780 = vld [vmem:[%s777 + $0x8] sm:$0xf]
        %v781 = vld [vmem:[%s777 + $0xc] sm:$0xf]
        %v782 = vld [vmem:[%s777 + $0x10] sm:$0xf]
        %v783 = vld [vmem:[%s777 + $0x14] sm:$0xf]
        %v784 = vld [vmem:[%s777 + $0x18] sm:$0xf]
        %v785 = vld [vmem:[%s777 + $0x1c] sm:$0xf]
        %v786 = vld [vmem:[%s777 + $0x20] sm:$0xf]
        %v787 = vld [vmem:[%s777 + $0x24] sm:$0xf]
        %v788 = vld [vmem:[%s777 + $0x28] sm:$0xf]
        %v789 = vld [vmem:[%s777 + $0x2c] sm:$0xf]
        %s790 = scalar_lea.vmem %s3, 4
        %v791 = vld [vmem:[%s790] sm:$0xf]
        %s792 = scalar_lea.vmem %s4, 48
        %v793 = vld [vmem:[%s792] sm:$0xf]
        %v794 = vld [vmem:[%s792 + $0x4] sm:$0xf]
        %v795 = vld [vmem:[%s792 + $0x8] sm:$0xf]
        %v796 = vld [vmem:[%s792 + $0xc] sm:$0xf]
        %v797 = vld [vmem:[%s792 + $0x10] sm:$0xf]
        %v798 = vld [vmem:[%s792 + $0x14] sm:$0xf]
        %v799 = vld [vmem:[%s792 + $0x18] sm:$0xf]
        %v800 = vld [vmem:[%s792 + $0x1c] sm:$0xf]
        %v801 = vld [vmem:[%s792 + $0x20] sm:$0xf]
        %v802 = vld [vmem:[%s792 + $0x24] sm:$0xf]
        %v803 = vld [vmem:[%s792 + $0x28] sm:$0xf]
        %v804 = vld [vmem:[%s792 + $0x2c] sm:$0xf]
        %s805 = scalar_lea.vmem %s5, 4
        %v806 = vld [vmem:[%s805] sm:$0x7]
        %s807 = scalar_lea.vmem %s6, 1
        %v808 = vld [vmem:[%s807] sm:$0x1]
        %809 = vst.msk [vmem:[#allocation2] sm:$0xff] %vm437, 0.0
        %810 = vst.msk [vmem:[#allocation2 + $0x8] sm:$0x3] %vm439, 0.0
        %811 = vst.msk [vmem:[#allocation2 + $0x1] sm:$0xff] %vm437, %v402
        %v812 = vld [vmem:[#allocation2] sm:$0xff]
        %v813 = vld [vmem:[#allocation2 + $0x1] sm:$0xff]
        %v814 = vld [vmem:[#allocation2 + $0x2] sm:$0xff]
        %816 = vrot.lane.b32.xlu0 %v813, 32
        %v817 = vpop.permute.xlu0 %816
        %820 = vrot.lane.b32.xlu0 %v814, 64
        %v821 = vpop.permute.xlu0 %820
        %v823 = vsel %vm437, %v812, %v817
        %v824 = vsel %vm454, %v823, %v821
        %v825 = vpack.c.bf16 %v824, %v824
        %v826 = vlaneseq
        %v827 = vshrl.u32 %v826, 7
        %v828 = vsub.s32 0, %v827
        %v829 = vrot.slane %v791, %v828
        %v842 = vunpack.c.l.b16 %v778
        %v843 = vunpack.c.l.b16 %v779
        %v844 = vunpack.c.l.b16 %v780
        %v845 = vunpack.c.l.b16 %v781
        %v846 = vunpack.c.l.b16 %v782
        %v847 = vunpack.c.l.b16 %v783
        %v848 = vunpack.c.l.b16 %v784
        %v849 = vunpack.c.l.b16 %v785
        %v850 = vunpack.c.l.b16 %v786
        %v851 = vunpack.c.l.b16 %v787
        %v852 = vunpack.c.l.b16 %v788
        %v853 = vunpack.c.l.b16 %v789
        %v854 = vpack.c.b16 %v843, %v842
        %v855 = vpack.c.b16 %v845, %v844
        %v856 = vpack.c.b16 %v847, %v846
        %v857 = vpack.c.b16 %v849, %v848
        %v858 = vpack.c.b16 %v851, %v850
        %v859 = vpack.c.b16 %v853, %v852
        %v867 = vsel %vm497, %v825, 0
        %869 = vmatprep.subr.bf16.mxu0 0
        %870 = vmatpush1.bf16.msra.mxu0 %v854
        %871 = vmatprep.subr.bf16.mxu0 0
        %872 = vmatpush1.bf16.msra.mxu0 %v855
        %873 = vmatprep.subr.bf16.mxu0 0
        %874 = vmatpush1.bf16.msra.mxu0 %v856
        %875 = vmatprep.subr.bf16.mxu0 0
        %876 = vmatpush1.bf16.msra.mxu0 %v857
        %877 = vmatprep.subr.bf16.mxu0 0
        %878 = vmatpush1.bf16.msra.mxu0 %v858
        %879 = vmatprep.subr.bf16.mxu0 0
        %880 = vmatpush1.bf16.msra.mxu0 %v859
        %881 = vmatprep.subr.bf16.mxu0 0
        %882 = vmatpush1.bf16.msra.mxu0 0
        %883 = vmatprep.subr.bf16.mxu0 0
        %884 = vmatpush1.bf16.msra.mxu0 0
        %885 = vmatprep.subr.bf16.mxu0 0
        %886 = vmatpush1.bf16.msra.mxu0 0
        %887 = vmatprep.subr.bf16.mxu0 0
        %888 = vmatpush1.bf16.msra.mxu0 0
        %889 = vmatprep.subr.bf16.mxu0 0
        %890 = vmatpush1.bf16.msra.mxu0 0
        %891 = vmatprep.subr.bf16.mxu0 0
        %892 = vmatpush1.bf16.msra.mxu0 0
        %893 = vmatprep.subr.bf16.mxu0 0
        %894 = vmatpush1.bf16.msra.mxu0 0
        %895 = vmatprep.subr.bf16.mxu0 0
        %896 = vmatpush1.bf16.msra.mxu0 0
        %897 = vmatprep.subr.bf16.mxu0 0
        %898 = vmatpush1.bf16.msra.mxu0 0
        %899 = vmatprep.subr.bf16.mxu0 0
        %900 = vmatpush1.bf16.msra.mxu0 0
        %901 = vmatprep.mubr.bf16.mxu0 0
        %902 = vmatmul.mubr.bf16.gmra.mrb[0].mxu0 %v867
        %v903 = vpop.f32.mrb[0].mxu0
        %v904 = vadd.f32 %v829, %v903
        %v905 = vpop.f32.mrb[0].mxu0
        %v906 = vpop.f32.mrb[0].mxu0
        %v907 = vpop.f32.mrb[0].mxu0
        %908 = vdwg.mxu0
        %v909 = vmax.f32 %v904, 0.0
        %v910 = vsel %vm437, %v909, 0.0
        %911 = vadd.xlane.f32.xlu0 %v910
        %v912 = vpop.xlane.xlu0 %911
        %v913 = vmul.f32 %v912, %v545
        %v914 = vsub.f32 %v909, %v913
        %v915 = vmul.f32 %v914, %v914
        %v916 = vsel %vm437, %v915, 0.0
        %917 = vadd.xlane.f32.xlu0 %v916
        %v918 = vpop.xlane.xlu0 %917
        %v919 = vmul.f32 %v918, %v545
        %v920 = vadd.f32 %v919, 1e-05
        %v921 = vrsqrt.pop %v920
        %v922 = vmul.f32 %v914, %v921
        %v923 = vlaneseq
        %v924 = vshrl.u32 %v923, 7
        %v925 = vsub.s32 1, %v924
        %v926 = vrot.slane %v791, %v925
        %v927 = vmul.f32 %v922, %v926
        %v928 = vlaneseq
        %v929 = vshrl.u32 %v928, 7
        %v930 = vsub.s32 2, %v929
        %v931 = vrot.slane %v791, %v930
        %v932 = vadd.f32 %v927, %v931
        %933 = vst.msk [vmem:[#allocation2] sm:$0xff] %vm437, 0.0
        %934 = vst.msk [vmem:[#allocation2 + $0x8] sm:$0x3] %vm439, 0.0
        %935 = vst.msk [vmem:[#allocation2 + $0x1] sm:$0xff] %vm437, %v932
        %v936 = vld [vmem:[#allocation2] sm:$0xff]
        %v937 = vld [vmem:[#allocation2 + $0x1] sm:$0xff]
        %v938 = vld [vmem:[#allocation2 + $0x2] sm:$0xff]
        %940 = vrot.lane.b32.xlu0 %v937, 32
        %v941 = vpop.permute.xlu0 %940
        %944 = vrot.lane.b32.xlu0 %v938, 64
        %v945 = vpop.permute.xlu0 %944
        %v947 = vsel %vm437, %v936, %v941
        %v948 = vsel %vm454, %v947, %v945
        %v949 = vpack.c.bf16 %v948, %v948
        %v950 = vlaneseq
        %v951 = vshrl.u32 %v950, 7
        %v952 = vsub.s32 0, %v951
        %v953 = vrot.slane %v806, %v952
        %v966 = vunpack.c.l.b16 %v793
        %v967 = vunpack.c.l.b16 %v794
        %v968 = vunpack.c.l.b16 %v795
        %v969 = vunpack.c.l.b16 %v796
        %v970 = vunpack.c.l.b16 %v797
        %v971 = vunpack.c.l.b16 %v798
        %v972 = vunpack.c.l.b16 %v799
        %v973 = vunpack.c.l.b16 %v800
        %v974 = vunpack.c.l.b16 %v801
        %v975 = vunpack.c.l.b16 %v802
        %v976 = vunpack.c.l.b16 %v803
        %v977 = vunpack.c.l.b16 %v804
        %v978 = vpack.c.b16 %v967, %v966
        %v979 = vpack.c.b16 %v969, %v968
        %v980 = vpack.c.b16 %v971, %v970
        %v981 = vpack.c.b16 %v973, %v972
        %v982 = vpack.c.b16 %v975, %v974
        %v983 = vpack.c.b16 %v977, %v976
        %v991 = vsel %vm497, %v949, 0
        %993 = vmatprep.subr.bf16.mxu0 0
        %994 = vmatpush1.bf16.msra.mxu0 %v978
        %995 = vmatprep.subr.bf16.mxu0 0
        %996 = vmatpush1.bf16.msra.mxu0 %v979
        %997 = vmatprep.subr.bf16.mxu0 0
        %998 = vmatpush1.bf16.msra.mxu0 %v980
        %999 = vmatprep.subr.bf16.mxu0 0
        %1000 = vmatpush1.bf16.msra.mxu0 %v981
        %1001 = vmatprep.subr.bf16.mxu0 0
        %1002 = vmatpush1.bf16.msra.mxu0 %v982
        %1003 = vmatprep.subr.bf16.mxu0 0
        %1004 = vmatpush1.bf16.msra.mxu0 %v983
        %1005 = vmatprep.subr.bf16.mxu0 0
        %1006 = vmatpush1.bf16.msra.mxu0 0
        %1007 = vmatprep.subr.bf16.mxu0 0
        %1008 = vmatpush1.bf16.msra.mxu0 0
        %1009 = vmatprep.subr.bf16.mxu0 0
        %1010 = vmatpush1.bf16.msra.mxu0 0
        %1011 = vmatprep.subr.bf16.mxu0 0
        %1012 = vmatpush1.bf16.msra.mxu0 0
        %1013 = vmatprep.subr.bf16.mxu0 0
        %1014 = vmatpush1.bf16.msra.mxu0 0
        %1015 = vmatprep.subr.bf16.mxu0 0
        %1016 = vmatpush1.bf16.msra.mxu0 0
        %1017 = vmatprep.subr.bf16.mxu0 0
        %1018 = vmatpush1.bf16.msra.mxu0 0
        %1019 = vmatprep.subr.bf16.mxu0 0
        %1020 = vmatpush1.bf16.msra.mxu0 0
        %1021 = vmatprep.subr.bf16.mxu0 0
        %1022 = vmatpush1.bf16.msra.mxu0 0
        %1023 = vmatprep.subr.bf16.mxu0 0
        %1024 = vmatpush1.bf16.msra.mxu0 0
        %1025 = vmatprep.mubr.bf16.mxu0 0
        %1026 = vmatmul.mubr.bf16.gmra.mrb[0].mxu0 %v991
        %v1027 = vpop.f32.mrb[0].mxu0
        %v1028 = vadd.f32 %v953, %v1027
        %v1029 = vpop.f32.mrb[0].mxu0
        %v1030 = vpop.f32.mrb[0].mxu0
        %v1031 = vpop.f32.mrb[0].mxu0
        %1032 = vdwg.mxu0
        %v1033 = vmax.f32 %v1028, 0.0
        %v1034 = vsel %vm437, %v1033, 0.0
        %1035 = vadd.xlane.f32.xlu0 %v1034
        %v1036 = vpop.xlane.xlu0 %1035
        %v1037 = vmul.f32 %v1036, %v545
        %v1038 = vsub.f32 %v1033, %v1037
        %v1039 = vmul.f32 %v1038, %v1038
        %v1040 = vsel %vm437, %v1039, 0.0
        %1041 = vadd.xlane.f32.xlu0 %v1040
        %v1042 = vpop.xlane.xlu0 %1041
        %v1043 = vmul.f32 %v1042, %v545
        %v1044 = vadd.f32 %v1043, 1e-05
        %v1045 = vrsqrt.pop %v1044
        %v1046 = vmul.f32 %v1038, %v1045
        %v1047 = vlaneseq
        %v1048 = vshrl.u32 %v1047, 7
        %v1049 = vsub.s32 1, %v1048
        %v1050 = vrot.slane %v806, %v1049
        %v1051 = vmul.f32 %v1046, %v1050
        %v1052 = vlaneseq
        %v1053 = vshrl.u32 %v1052, 7
        %v1054 = vsub.s32 2, %v1053
        %v1055 = vrot.slane %v806, %v1054
        %v1056 = vadd.f32 %v1051, %v1055
        %v1057 = vlaneseq
        %v1058 = vshrl.u32 %v1057, 7
        %v1059 = vsub.s32 3, %v1058
        %v1060 = vrot.slane %v791, %v1059
        %v1061 = vmul.f32 %v1056, %v1060
        %v1062 = vsel %vm437, %v1061, 0.0
        %1063 = vadd.xlane.f32.xlu0 %v1062
        %v1064 = vpop.xlane.xlu0 %1063
        %v1066 = vlaneseq
        %v1067 = vshrl.u32 %v1066, 7
        %v1068 = vsub.s32 0, %v1067
        %v1069 = vrot.slane %v808, %v1068
        %v1071 = vadd.f32 %v1064, %v1069
        %1072 = vset.pattern.permute.xlu0 0
        %1073 = vperm.xlu0 %1072, %v808
        %v1074 = vpop.permute.xlu0 %1073
        %v1076 = vlaneseq
        %v1077 = vshrl.u32 %v1076, 7
        %v1078 = vsub.s32 0, %v1077
        %v1079 = vrot.slane %v1074, %v1078
        %v1081 = vrot.slane %v791, 3
        %v1082 = vsel %vm437, %v1081, 0
        %v1085 = vsel %vm437, %v1056, 0
        %1087 = vmatprep.subr.mxu0 0.0
        %1088 = vmatpush1.xpose.msra.mxu0 %v1085
        %1089 = vmatprep.subr.mxu0 0.0
        %1090 = vmatpush1.xpose.msra.mxu0 0.0
        %1091 = vmatprep.subr.mxu0 0.0
        %1092 = vmatpush1.xpose.msra.mxu0 0.0
        %1093 = vmatprep.subr.mxu0 0.0
        %1094 = vmatpush1.xpose.msra.mxu0 0.0
        %1095 = vmatprep.subr.mxu0 0.0
        %1096 = vmatpush1.xpose.msra.mxu0 0.0
        %1097 = vmatprep.subr.mxu0 0.0
        %1098 = vmatpush1.xpose.msra.mxu0 0.0
        %1099 = vmatprep.subr.mxu0 0.0
        %1100 = vmatpush1.xpose.msra.mxu0 0.0
        %1101 = vmatprep.subr.mxu0 0.0
        %1102 = vmatpush1.xpose.msra.mxu0 0.0
        %1103 = vmatprep.subr.mxu0 0.0
        %1104 = vmatpush1.xpose.msra.mxu0 0.0
        %1105 = vmatprep.subr.mxu0 0.0
        %1106 = vmatpush1.xpose.msra.mxu0 0.0
        %1107 = vmatprep.subr.mxu0 0.0
        %1108 = vmatpush1.xpose.msra.mxu0 0.0
        %1109 = vmatprep.subr.mxu0 0.0
        %1110 = vmatpush1.xpose.msra.mxu0 0.0
        %1111 = vmatprep.subr.mxu0 0.0
        %1112 = vmatpush1.xpose.msra.mxu0 0.0
        %1113 = vmatprep.subr.mxu0 0.0
        %1114 = vmatpush1.xpose.msra.mxu0 0.0
        %1115 = vmatprep.subr.mxu0 0.0
        %1116 = vmatpush1.xpose.msra.mxu0 0.0
        %1117 = vmatprep.subr.mxu0 0.0
        %1118 = vmatpush1.xpose.msra.mxu0 0.0
        %1119 = vmatprep.subr.mxu0 0.0
        %1120 = vmatpush1.xpose.msra.mxu0 0.0
        %1121 = vmatprep.subr.mxu0 0.0
        %1122 = vmatpush1.xpose.msra.mxu0 0.0
        %1123 = vmatprep.subr.mxu0 0.0
        %1124 = vmatpush1.xpose.msra.mxu0 0.0
        %1125 = vmatprep.subr.mxu0 0.0
        %1126 = vmatpush1.xpose.msra.mxu0 0.0
        %1127 = vmatprep.subr.mxu0 0.0
        %1128 = vmatpush1.xpose.msra.mxu0 0.0
        %1129 = vmatprep.subr.mxu0 0.0
        %1130 = vmatpush1.xpose.msra.mxu0 0.0
        %1131 = vmatprep.subr.mxu0 0.0
        %1132 = vmatpush1.xpose.msra.mxu0 0.0
        %1133 = vmatprep.subr.mxu0 0.0
        %1134 = vmatpush1.xpose.msra.mxu0 0.0
        %1135 = vmatprep.subr.mxu0 0.0
        %1136 = vmatpush1.xpose.msra.mxu0 0.0
        %1137 = vmatprep.subr.mxu0 0.0
        %1138 = vmatpush1.xpose.msra.mxu0 0.0
        %1139 = vmatprep.subr.mxu0 0.0
        %1140 = vmatpush1.xpose.msra.mxu0 0.0
        %1141 = vmatprep.subr.mxu0 0.0
        %1142 = vmatpush1.xpose.msra.mxu0 0.0
        %1143 = vmatprep.subr.mxu0 0.0
        %1144 = vmatpush1.xpose.msra.mxu0 0.0
        %1145 = vmatprep.subr.mxu0 0.0
        %1146 = vmatpush1.xpose.msra.mxu0 0.0
        %1147 = vmatprep.subr.mxu0 0.0
        %1148 = vmatpush1.xpose.msra.mxu0 0.0
        %1149 = vmatprep.subr.mxu0 0.0
        %1150 = vmatpush1.xpose.msra.mxu0 0.0
        %1151 = vmatprep.mubr.f32.mxu0 0.0
        %1152 = vmatmul.mubr.f32.gmra.mrb[0].mxu0 %v1082
        %v1153 = vpop.f32.mrb[0].mxu0
        %v1154 = vadd.f32 %v1079, %v1153
        %v1155 = vpop.f32.mrb[0].mxu0
        %1156 = vdwg.mxu0
        %v1157 = vsel %vm406, 0.0, %v1071
        %v1158 = vsel %vm409, 0.0, %v1154
        %v1159 = vld [vmem:[%s7] sm:$0x1]
        %1161 = vset.pattern.permute.xlu0 0
        %1162 = vperm.xlu0 %1161, %v1157
        %v1163 = vpop.permute.xlu0 %1162
        %v1166 = vlaneseq
        %v1167 = vshrl.u32 %v1166, 7
        %v1168 = vsub.s32 0, %v1167
        %v1169 = vrot.slane %v1159, %v1168
        %vm1171 = vcmp.gt.f32.partialorder %v1163, %v1169
        %v1172 = vsel %vm1171, 1, 0
        %vm1173 = vcmask 121856
        %v1174 = vsel %vm1173, %v1172, 0
        %v1175 = vand.u32 %v1174, 65535
        %v1176 = vshrl.u32 %v1174, 16
        %v1177 = vcvt.s32.f32 %v1175
        %v1178 = vcvt.s32.f32 %v1176
        %1179 = vadd.xlane.f32.xlu0 %v1177
        %v1180 = vpop.xlane.xlu0 %1179
        %1181 = vadd.xlane.f32.xlu0 %v1178
        %v1182 = vpop.xlane.xlu0 %1181
        %v1183 = vcvt.f32.s32 %v1180
        %v1184 = vcvt.f32.s32 %v1182
        %v1185 = vshll.u32 %v1184, 16
        %v1186 = vadd.s32 %v1185, %v1183
        %vm1187 = vcmp.eq.s32.totalorder %v1186, %v408
        %v1188 = vsel %vm1187, 1, 0
        %v1189 = vcvt.s32.f32 %v1188
        %v1190 = vld [vmem:[%s9] sm:$0xff]
        %v1191 = vld [vmem:[%s9 + $0x8] sm:$0xff]
        %vm1192 = vcmask 130048
        %v1194 = vsel %vm1192, %v1189, 0
        %1196 = vmatprep.subr.mxu0 0.0
        %1197 = vmatpush1.msra.mxu0 %v1190
        %1198 = vmatprep.subr.mxu0 0.0
        %1199 = vmatpush1.msra.mxu0 %v1191
        %1200 = vmatprep.subr.mxu0 0.0
        %1201 = vmatpush1.msra.mxu0 0.0
        %1202 = vmatprep.subr.mxu0 0.0
        %1203 = vmatpush1.msra.mxu0 0.0
        %1204 = vmatprep.subr.mxu0 0.0
        %1205 = vmatpush1.msra.mxu0 0.0
        %1206 = vmatprep.subr.mxu0 0.0
        %1207 = vmatpush1.msra.mxu0 0.0
        %1208 = vmatprep.subr.mxu0 0.0
        %1209 = vmatpush1.msra.mxu0 0.0
        %1210 = vmatprep.subr.mxu0 0.0
        %1211 = vmatpush1.msra.mxu0 0.0
        %1212 = vmatprep.subr.mxu0 0.0
        %1213 = vmatpush1.msra.mxu0 0.0
        %1214 = vmatprep.subr.mxu0 0.0
        %1215 = vmatpush1.msra.mxu0 0.0
        %1216 = vmatprep.subr.mxu0 0.0
        %1217 = vmatpush1.msra.mxu0 0.0
        %1218 = vmatprep.subr.mxu0 0.0
        %1219 = vmatpush1.msra.mxu0 0.0
        %1220 = vmatprep.subr.mxu0 0.0
        %1221 = vmatpush1.msra.mxu0 0.0
        %1222 = vmatprep.subr.mxu0 0.0
        %1223 = vmatpush1.msra.mxu0 0.0
        %1224 = vmatprep.subr.mxu0 0.0
        %1225 = vmatpush1.msra.mxu0 0.0
        %1226 = vmatprep.subr.mxu0 0.0
        %1227 = vmatpush1.msra.mxu0 0.0
        %1228 = vmatprep.subr.mxu0 0.0
        %1229 = vmatpush1.msra.mxu0 0.0
        %1230 = vmatprep.subr.mxu0 0.0
        %1231 = vmatpush1.msra.mxu0 0.0
        %1232 = vmatprep.subr.mxu0 0.0
        %1233 = vmatpush1.msra.mxu0 0.0
        %1234 = vmatprep.subr.mxu0 0.0
        %1235 = vmatpush1.msra.mxu0 0.0
        %1236 = vmatprep.subr.mxu0 0.0
        %1237 = vmatpush1.msra.mxu0 0.0
        %1238 = vmatprep.subr.mxu0 0.0
        %1239 = vmatpush1.msra.mxu0 0.0
        %1240 = vmatprep.subr.mxu0 0.0
        %1241 = vmatpush1.msra.mxu0 0.0
        %1242 = vmatprep.subr.mxu0 0.0
        %1243 = vmatpush1.msra.mxu0 0.0
        %1244 = vmatprep.subr.mxu0 0.0
        %1245 = vmatpush1.msra.mxu0 0.0
        %1246 = vmatprep.subr.mxu0 0.0
        %1247 = vmatpush1.msra.mxu0 0.0
        %1248 = vmatprep.subr.mxu0 0.0
        %1249 = vmatpush1.msra.mxu0 0.0
        %1250 = vmatprep.subr.mxu0 0.0
        %1251 = vmatpush1.msra.mxu0 0.0
        %1252 = vmatprep.subr.mxu0 0.0
        %1253 = vmatpush1.msra.mxu0 0.0
        %1254 = vmatprep.subr.mxu0 0.0
        %1255 = vmatpush1.msra.mxu0 0.0
        %1256 = vmatprep.subr.mxu0 0.0
        %1257 = vmatpush1.msra.mxu0 0.0
        %1258 = vmatprep.subr.mxu0 0.0
        %1259 = vmatpush1.msra.mxu0 0.0
        %1260 = vmatprep.mubr.f32.mxu0 0.0
        %1261 = vmatmul.mubr.f32.gmra.mrb[0].mxu0 %v1194
        %v1262 = vpop.f32.mrb[0].mxu0
        %v1263 = vadd.f32 0.0, %v1262
        %v1264 = vpop.f32.mrb[0].mxu0
        %1265 = vdwg.mxu0
        %v1266 = vadd.f32 %v402, %v1263
        %s1267 = scalar_lea.vmem %s2, 96
        %v1268 = vld [vmem:[%s1267] sm:$0xf]
        %v1269 = vld [vmem:[%s1267 + $0x4] sm:$0xf]
        %v1270 = vld [vmem:[%s1267 + $0x8] sm:$0xf]
        %v1271 = vld [vmem:[%s1267 + $0xc] sm:$0xf]
        %v1272 = vld [vmem:[%s1267 + $0x10] sm:$0xf]
        %v1273 = vld [vmem:[%s1267 + $0x14] sm:$0xf]
        %v1274 = vld [vmem:[%s1267 + $0x18] sm:$0xf]
        %v1275 = vld [vmem:[%s1267 + $0x1c] sm:$0xf]
        %v1276 = vld [vmem:[%s1267 + $0x20] sm:$0xf]
        %v1277 = vld [vmem:[%s1267 + $0x24] sm:$0xf]
        %v1278 = vld [vmem:[%s1267 + $0x28] sm:$0xf]
        %v1279 = vld [vmem:[%s1267 + $0x2c] sm:$0xf]
        %s1280 = scalar_lea.vmem %s3, 8
        %v1281 = vld [vmem:[%s1280] sm:$0xf]
        %s1282 = scalar_lea.vmem %s4, 96
        %v1283 = vld [vmem:[%s1282] sm:$0xf]
        %v1284 = vld [vmem:[%s1282 + $0x4] sm:$0xf]
        %v1285 = vld [vmem:[%s1282 + $0x8] sm:$0xf]
        %v1286 = vld [vmem:[%s1282 + $0xc] sm:$0xf]
        %v1287 = vld [vmem:[%s1282 + $0x10] sm:$0xf]
        %v1288 = vld [vmem:[%s1282 + $0x14] sm:$0xf]
        %v1289 = vld [vmem:[%s1282 + $0x18] sm:$0xf]
        %v1290 = vld [vmem:[%s1282 + $0x1c] sm:$0xf]
        %v1291 = vld [vmem:[%s1282 + $0x20] sm:$0xf]
        %v1292 = vld [vmem:[%s1282 + $0x24] sm:$0xf]
        %v1293 = vld [vmem:[%s1282 + $0x28] sm:$0xf]
        %v1294 = vld [vmem:[%s1282 + $0x2c] sm:$0xf]
        %s1295 = scalar_lea.vmem %s5, 8
        %v1296 = vld [vmem:[%s1295] sm:$0x7]
        %s1297 = scalar_lea.vmem %s6, 2
        %v1298 = vld [vmem:[%s1297] sm:$0x1]
        %1299 = vst.msk [vmem:[#allocation2] sm:$0xff] %vm437, 0.0
        %1300 = vst.msk [vmem:[#allocation2 + $0x8] sm:$0x3] %vm439, 0.0
        %1301 = vst.msk [vmem:[#allocation2 + $0x1] sm:$0xff] %vm437, %v1266
        %v1302 = vld [vmem:[#allocation2] sm:$0xff]
        %v1303 = vld [vmem:[#allocation2 + $0x1] sm:$0xff]
        %v1304 = vld [vmem:[#allocation2 + $0x2] sm:$0xff]
        %1306 = vrot.lane.b32.xlu0 %v1303, 32
        %v1307 = vpop.permute.xlu0 %1306
        %1310 = vrot.lane.b32.xlu0 %v1304, 64
        %v1311 = vpop.permute.xlu0 %1310
        %v1313 = vsel %vm437, %v1302, %v1307
        %v1314 = vsel %vm454, %v1313, %v1311
        %v1315 = vpack.c.bf16 %v1314, %v1314
        %v1316 = vlaneseq
        %v1317 = vshrl.u32 %v1316, 7
        %v1318 = vsub.s32 0, %v1317
        %v1319 = vrot.slane %v1281, %v1318
        %v1332 = vunpack.c.l.b16 %v1268
        %v1333 = vunpack.c.l.b16 %v1269
        %v1334 = vunpack.c.l.b16 %v1270
        %v1335 = vunpack.c.l.b16 %v1271
        %v1336 = vunpack.c.l.b16 %v1272
        %v1337 = vunpack.c.l.b16 %v1273
        %v1338 = vunpack.c.l.b16 %v1274
        %v1339 = vunpack.c.l.b16 %v1275
        %v1340 = vunpack.c.l.b16 %v1276
        %v1341 = vunpack.c.l.b16 %v1277
        %v1342 = vunpack.c.l.b16 %v1278
        %v1343 = vunpack.c.l.b16 %v1279
        %v1344 = vpack.c.b16 %v1333, %v1332
        %v1345 = vpack.c.b16 %v1335, %v1334
        %v1346 = vpack.c.b16 %v1337, %v1336
        %v1347 = vpack.c.b16 %v1339, %v1338
        %v1348 = vpack.c.b16 %v1341, %v1340
        %v1349 = vpack.c.b16 %v1343, %v1342
        %v1357 = vsel %vm497, %v1315, 0
        %1359 = vmatprep.subr.bf16.mxu0 0
        %1360 = vmatpush1.bf16.msra.mxu0 %v1344
        %1361 = vmatprep.subr.bf16.mxu0 0
        %1362 = vmatpush1.bf16.msra.mxu0 %v1345
        %1363 = vmatprep.subr.bf16.mxu0 0
        %1364 = vmatpush1.bf16.msra.mxu0 %v1346
        %1365 = vmatprep.subr.bf16.mxu0 0
        %1366 = vmatpush1.bf16.msra.mxu0 %v1347
        %1367 = vmatprep.subr.bf16.mxu0 0
        %1368 = vmatpush1.bf16.msra.mxu0 %v1348
        %1369 = vmatprep.subr.bf16.mxu0 0
        %1370 = vmatpush1.bf16.msra.mxu0 %v1349
        %1371 = vmatprep.subr.bf16.mxu0 0
        %1372 = vmatpush1.bf16.msra.mxu0 0
        %1373 = vmatprep.subr.bf16.mxu0 0
        %1374 = vmatpush1.bf16.msra.mxu0 0
        %1375 = vmatprep.subr.bf16.mxu0 0
        %1376 = vmatpush1.bf16.msra.mxu0 0
        %1377 = vmatprep.subr.bf16.mxu0 0
        %1378 = vmatpush1.bf16.msra.mxu0 0
        %1379 = vmatprep.subr.bf16.mxu0 0
        %1380 = vmatpush1.bf16.msra.mxu0 0
        %1381 = vmatprep.subr.bf16.mxu0 0
        %1382 = vmatpush1.bf16.msra.mxu0 0
        %1383 = vmatprep.subr.bf16.mxu0 0
        %1384 = vmatpush1.bf16.msra.mxu0 0
        %1385 = vmatprep.subr.bf16.mxu0 0
        %1386 = vmatpush1.bf16.msra.mxu0 0
        %1387 = vmatprep.subr.bf16.mxu0 0
        %1388 = vmatpush1.bf16.msra.mxu0 0
        %1389 = vmatprep.subr.bf16.mxu0 0
        %1390 = vmatpush1.bf16.msra.mxu0 0
        %1391 = vmatprep.mubr.bf16.mxu0 0
        %1392 = vmatmul.mubr.bf16.gmra.mrb[0].mxu0 %v1357
        %v1393 = vpop.f32.mrb[0].mxu0
        %v1394 = vadd.f32 %v1319, %v1393
        %v1395 = vpop.f32.mrb[0].mxu0
        %v1396 = vpop.f32.mrb[0].mxu0
        %v1397 = vpop.f32.mrb[0].mxu0
        %1398 = vdwg.mxu0
        %v1399 = vmax.f32 %v1394, 0.0
        %v1400 = vsel %vm437, %v1399, 0.0
        %1401 = vadd.xlane.f32.xlu0 %v1400
        %v1402 = vpop.xlane.xlu0 %1401
        %v1403 = vmul.f32 %v1402, %v545
        %v1404 = vsub.f32 %v1399, %v1403
        %v1405 = vmul.f32 %v1404, %v1404
        %v1406 = vsel %vm437, %v1405, 0.0
        %1407 = vadd.xlane.f32.xlu0 %v1406
        %v1408 = vpop.xlane.xlu0 %1407
        %v1409 = vmul.f32 %v1408, %v545
        %v1410 = vadd.f32 %v1409, 1e-05
        %v1411 = vrsqrt.pop %v1410
        %v1412 = vmul.f32 %v1404, %v1411
        %v1413 = vlaneseq
        %v1414 = vshrl.u32 %v1413, 7
        %v1415 = vsub.s32 1, %v1414
        %v1416 = vrot.slane %v1281, %v1415
        %v1417 = vmul.f32 %v1412, %v1416
        %v1418 = vlaneseq
        %v1419 = vshrl.u32 %v1418, 7
        %v1420 = vsub.s32 2, %v1419
        %v1421 = vrot.slane %v1281, %v1420
        %v1422 = vadd.f32 %v1417, %v1421
        %1423 = vst.msk [vmem:[#allocation2] sm:$0xff] %vm437, 0.0
        %1424 = vst.msk [vmem:[#allocation2 + $0x8] sm:$0x3] %vm439, 0.0
        %1425 = vst.msk [vmem:[#allocation2 + $0x1] sm:$0xff] %vm437, %v1422
        %v1426 = vld [vmem:[#allocation2] sm:$0xff]
        %v1427 = vld [vmem:[#allocation2 + $0x1] sm:$0xff]
        %v1428 = vld [vmem:[#allocation2 + $0x2] sm:$0xff]
        %1430 = vrot.lane.b32.xlu0 %v1427, 32
        %v1431 = vpop.permute.xlu0 %1430
        %1434 = vrot.lane.b32.xlu0 %v1428, 64
        %v1435 = vpop.permute.xlu0 %1434
        %v1437 = vsel %vm437, %v1426, %v1431
        %v1438 = vsel %vm454, %v1437, %v1435
        %v1439 = vpack.c.bf16 %v1438, %v1438
        %v1440 = vlaneseq
        %v1441 = vshrl.u32 %v1440, 7
        %v1442 = vsub.s32 0, %v1441
        %v1443 = vrot.slane %v1296, %v1442
        %v1456 = vunpack.c.l.b16 %v1283
        %v1457 = vunpack.c.l.b16 %v1284
        %v1458 = vunpack.c.l.b16 %v1285
        %v1459 = vunpack.c.l.b16 %v1286
        %v1460 = vunpack.c.l.b16 %v1287
        %v1461 = vunpack.c.l.b16 %v1288
        %v1462 = vunpack.c.l.b16 %v1289
        %v1463 = vunpack.c.l.b16 %v1290
        %v1464 = vunpack.c.l.b16 %v1291
        %v1465 = vunpack.c.l.b16 %v1292
        %v1466 = vunpack.c.l.b16 %v1293
        %v1467 = vunpack.c.l.b16 %v1294
        %v1468 = vpack.c.b16 %v1457, %v1456
        %v1469 = vpack.c.b16 %v1459, %v1458
        %v1470 = vpack.c.b16 %v1461, %v1460
        %v1471 = vpack.c.b16 %v1463, %v1462
        %v1472 = vpack.c.b16 %v1465, %v1464
        %v1473 = vpack.c.b16 %v1467, %v1466
        %v1481 = vsel %vm497, %v1439, 0
        %1483 = vmatprep.subr.bf16.mxu0 0
        %1484 = vmatpush1.bf16.msra.mxu0 %v1468
        %1485 = vmatprep.subr.bf16.mxu0 0
        %1486 = vmatpush1.bf16.msra.mxu0 %v1469
        %1487 = vmatprep.subr.bf16.mxu0 0
        %1488 = vmatpush1.bf16.msra.mxu0 %v1470
        %1489 = vmatprep.subr.bf16.mxu0 0
        %1490 = vmatpush1.bf16.msra.mxu0 %v1471
        %1491 = vmatprep.subr.bf16.mxu0 0
        %1492 = vmatpush1.bf16.msra.mxu0 %v1472
        %1493 = vmatprep.subr.bf16.mxu0 0
        %1494 = vmatpush1.bf16.msra.mxu0 %v1473
        %1495 = vmatprep.subr.bf16.mxu0 0
        %1496 = vmatpush1.bf16.msra.mxu0 0
        %1497 = vmatprep.subr.bf16.mxu0 0
        %1498 = vmatpush1.bf16.msra.mxu0 0
        %1499 = vmatprep.subr.bf16.mxu0 0
        %1500 = vmatpush1.bf16.msra.mxu0 0
        %1501 = vmatprep.subr.bf16.mxu0 0
        %1502 = vmatpush1.bf16.msra.mxu0 0
        %1503 = vmatprep.subr.bf16.mxu0 0
        %1504 = vmatpush1.bf16.msra.mxu0 0
        %1505 = vmatprep.subr.bf16.mxu0 0
        %1506 = vmatpush1.bf16.msra.mxu0 0
        %1507 = vmatprep.subr.bf16.mxu0 0
        %1508 = vmatpush1.bf16.msra.mxu0 0
        %1509 = vmatprep.subr.bf16.mxu0 0
        %1510 = vmatpush1.bf16.msra.mxu0 0
        %1511 = vmatprep.subr.bf16.mxu0 0
        %1512 = vmatpush1.bf16.msra.mxu0 0
        %1513 = vmatprep.subr.bf16.mxu0 0
        %1514 = vmatpush1.bf16.msra.mxu0 0
        %1515 = vmatprep.mubr.bf16.mxu0 0
        %1516 = vmatmul.mubr.bf16.gmra.mrb[0].mxu0 %v1481
        %v1517 = vpop.f32.mrb[0].mxu0
        %v1518 = vadd.f32 %v1443, %v1517
        %v1519 = vpop.f32.mrb[0].mxu0
        %v1520 = vpop.f32.mrb[0].mxu0
        %v1521 = vpop.f32.mrb[0].mxu0
        %1522 = vdwg.mxu0
        %v1523 = vmax.f32 %v1518, 0.0
        %v1524 = vsel %vm437, %v1523, 0.0
        %1525 = vadd.xlane.f32.xlu0 %v1524
        %v1526 = vpop.xlane.xlu0 %1525
        %v1527 = vmul.f32 %v1526, %v545
        %v1528 = vsub.f32 %v1523, %v1527
        %v1529 = vmul.f32 %v1528, %v1528
        %v1530 = vsel %vm437, %v1529, 0.0
        %1531 = vadd.xlane.f32.xlu0 %v1530
        %v1532 = vpop.xlane.xlu0 %1531
        %v1533 = vmul.f32 %v1532, %v545
        %v1534 = vadd.f32 %v1533, 1e-05
        %v1535 = vrsqrt.pop %v1534
        %v1536 = vmul.f32 %v1528, %v1535
        %v1537 = vlaneseq
        %v1538 = vshrl.u32 %v1537, 7
        %v1539 = vsub.s32 1, %v1538
        %v1540 = vrot.slane %v1296, %v1539
        %v1541 = vmul.f32 %v1536, %v1540
        %v1542 = vlaneseq
        %v1543 = vshrl.u32 %v1542, 7
        %v1544 = vsub.s32 2, %v1543
        %v1545 = vrot.slane %v1296, %v1544
        %v1546 = vadd.f32 %v1541, %v1545
        %v1547 = vlaneseq
        %v1548 = vshrl.u32 %v1547, 7
        %v1549 = vsub.s32 3, %v1548
        %v1550 = vrot.slane %v1281, %v1549
        %v1551 = vmul.f32 %v1546, %v1550
        %v1552 = vsel %vm437, %v1551, 0.0
        %1553 = vadd.xlane.f32.xlu0 %v1552
        %v1554 = vpop.xlane.xlu0 %1553
        %v1556 = vlaneseq
        %v1557 = vshrl.u32 %v1556, 7
        %v1558 = vsub.s32 0, %v1557
        %v1559 = vrot.slane %v1298, %v1558
        %v1561 = vadd.f32 %v1554, %v1559
        %1562 = vset.pattern.permute.xlu0 0
        %1563 = vperm.xlu0 %1562, %v1298
        %v1564 = vpop.permute.xlu0 %1563
        %v1566 = vlaneseq
        %v1567 = vshrl.u32 %v1566, 7
        %v1568 = vsub.s32 0, %v1567
        %v1569 = vrot.slane %v1564, %v1568
        %v1571 = vrot.slane %v1281, 3
        %v1572 = vsel %vm437, %v1571, 0
        %v1575 = vsel %vm437, %v1546, 0
        %1577 = vmatprep.subr.mxu0 0.0
        %1578 = vmatpush1.xpose.msra.mxu0 %v1575
        %1579 = vmatprep.subr.mxu0 0.0
        %1580 = vmatpush1.xpose.msra.mxu0 0.0
        %1581 = vmatprep.subr.mxu0 0.0
        %1582 = vmatpush1.xpose.msra.mxu0 0.0
        %1583 = vmatprep.subr.mxu0 0.0
        %1584 = vmatpush1.xpose.msra.mxu0 0.0
        %1585 = vmatprep.subr.mxu0 0.0
        %1586 = vmatpush1.xpose.msra.mxu0 0.0
        %1587 = vmatprep.subr.mxu0 0.0
        %1588 = vmatpush1.xpose.msra.mxu0 0.0
        %1589 = vmatprep.subr.mxu0 0.0
        %1590 = vmatpush1.xpose.msra.mxu0 0.0
        %1591 = vmatprep.subr.mxu0 0.0
        %1592 = vmatpush1.xpose.msra.mxu0 0.0
        %1593 = vmatprep.subr.mxu0 0.0
        %1594 = vmatpush1.xpose.msra.mxu0 0.0
        %1595 = vmatprep.subr.mxu0 0.0
        %1596 = vmatpush1.xpose.msra.mxu0 0.0
        %1597 = vmatprep.subr.mxu0 0.0
        %1598 = vmatpush1.xpose.msra.mxu0 0.0
        %1599 = vmatprep.subr.mxu0 0.0
        %1600 = vmatpush1.xpose.msra.mxu0 0.0
        %1601 = vmatprep.subr.mxu0 0.0
        %1602 = vmatpush1.xpose.msra.mxu0 0.0
        %1603 = vmatprep.subr.mxu0 0.0
        %1604 = vmatpush1.xpose.msra.mxu0 0.0
        %1605 = vmatprep.subr.mxu0 0.0
        %1606 = vmatpush1.xpose.msra.mxu0 0.0
        %1607 = vmatprep.subr.mxu0 0.0
        %1608 = vmatpush1.xpose.msra.mxu0 0.0
        %1609 = vmatprep.subr.mxu0 0.0
        %1610 = vmatpush1.xpose.msra.mxu0 0.0
        %1611 = vmatprep.subr.mxu0 0.0
        %1612 = vmatpush1.xpose.msra.mxu0 0.0
        %1613 = vmatprep.subr.mxu0 0.0
        %1614 = vmatpush1.xpose.msra.mxu0 0.0
        %1615 = vmatprep.subr.mxu0 0.0
        %1616 = vmatpush1.xpose.msra.mxu0 0.0
        %1617 = vmatprep.subr.mxu0 0.0
        %1618 = vmatpush1.xpose.msra.mxu0 0.0
        %1619 = vmatprep.subr.mxu0 0.0
        %1620 = vmatpush1.xpose.msra.mxu0 0.0
        %1621 = vmatprep.subr.mxu0 0.0
        %1622 = vmatpush1.xpose.msra.mxu0 0.0
        %1623 = vmatprep.subr.mxu0 0.0
        %1624 = vmatpush1.xpose.msra.mxu0 0.0
        %1625 = vmatprep.subr.mxu0 0.0
        %1626 = vmatpush1.xpose.msra.mxu0 0.0
        %1627 = vmatprep.subr.mxu0 0.0
        %1628 = vmatpush1.xpose.msra.mxu0 0.0
        %1629 = vmatprep.subr.mxu0 0.0
        %1630 = vmatpush1.xpose.msra.mxu0 0.0
        %1631 = vmatprep.subr.mxu0 0.0
        %1632 = vmatpush1.xpose.msra.mxu0 0.0
        %1633 = vmatprep.subr.mxu0 0.0
        %1634 = vmatpush1.xpose.msra.mxu0 0.0
        %1635 = vmatprep.subr.mxu0 0.0
        %1636 = vmatpush1.xpose.msra.mxu0 0.0
        %1637 = vmatprep.subr.mxu0 0.0
        %1638 = vmatpush1.xpose.msra.mxu0 0.0
        %1639 = vmatprep.subr.mxu0 0.0
        %1640 = vmatpush1.xpose.msra.mxu0 0.0
        %1641 = vmatprep.mubr.f32.mxu0 0.0
        %1642 = vmatmul.mubr.f32.gmra.mrb[0].mxu0 %v1572
        %v1643 = vpop.f32.mrb[0].mxu0
        %v1644 = vadd.f32 %v1569, %v1643
        %v1645 = vpop.f32.mrb[0].mxu0
        %1646 = vdwg.mxu0
        %v1647 = vsel %vm406, 0.0, %v1561
        %v1648 = vsel %vm409, 0.0, %v1644
        %v1649 = vld [vmem:[%s8] sm:$0x1]
        %1651 = vset.pattern.permute.xlu0 0
        %1652 = vperm.xlu0 %1651, %v1647
        %v1653 = vpop.permute.xlu0 %1652
        %v1656 = vlaneseq
        %v1657 = vshrl.u32 %v1656, 7
        %v1658 = vsub.s32 0, %v1657
        %v1659 = vrot.slane %v1649, %v1658
        %vm1661 = vcmp.gt.f32.partialorder %v1653, %v1659
        %v1662 = vsel %vm1661, 1, 0
        %v1663 = vsel %vm1173, %v1662, 0
        %v1664 = vand.u32 %v1663, 65535
        %v1665 = vshrl.u32 %v1663, 16
        %v1666 = vcvt.s32.f32 %v1664
        %v1667 = vcvt.s32.f32 %v1665
        %1668 = vadd.xlane.f32.xlu0 %v1666
        %v1669 = vpop.xlane.xlu0 %1668
        %1670 = vadd.xlane.f32.xlu0 %v1667
        %v1671 = vpop.xlane.xlu0 %1670
        %v1672 = vcvt.f32.s32 %v1669
        %v1673 = vcvt.f32.s32 %v1671
        %v1674 = vshll.u32 %v1673, 16
        %v1675 = vadd.s32 %v1674, %v1672
        %vm1676 = vcmp.eq.s32.totalorder %v1675, %v408
        %v1677 = vsel %vm1676, 1, 0
        %v1678 = vcvt.s32.f32 %v1677
        %v1679 = vld [vmem:[%s10] sm:$0xff]
        %v1680 = vld [vmem:[%s10 + $0x8] sm:$0xff]
        %v1682 = vsel %vm1192, %v1678, 0
        %1684 = vmatprep.subr.mxu0 0.0
        %1685 = vmatpush1.msra.mxu0 %v1679
        %1686 = vmatprep.subr.mxu0 0.0
        %1687 = vmatpush1.msra.mxu0 %v1680
        %1688 = vmatprep.subr.mxu0 0.0
        %1689 = vmatpush1.msra.mxu0 0.0
        %1690 = vmatprep.subr.mxu0 0.0
        %1691 = vmatpush1.msra.mxu0 0.0
        %1692 = vmatprep.subr.mxu0 0.0
        %1693 = vmatpush1.msra.mxu0 0.0
        %1694 = vmatprep.subr.mxu0 0.0
        %1695 = vmatpush1.msra.mxu0 0.0
        %1696 = vmatprep.subr.mxu0 0.0
        %1697 = vmatpush1.msra.mxu0 0.0
        %1698 = vmatprep.subr.mxu0 0.0
        %1699 = vmatpush1.msra.mxu0 0.0
        %1700 = vmatprep.subr.mxu0 0.0
        %1701 = vmatpush1.msra.mxu0 0.0
        %1702 = vmatprep.subr.mxu0 0.0
        %1703 = vmatpush1.msra.mxu0 0.0
        %1704 = vmatprep.subr.mxu0 0.0
        %1705 = vmatpush1.msra.mxu0 0.0
        %1706 = vmatprep.subr.mxu0 0.0
        %1707 = vmatpush1.msra.mxu0 0.0
        %1708 = vmatprep.subr.mxu0 0.0
        %1709 = vmatpush1.msra.mxu0 0.0
        %1710 = vmatprep.subr.mxu0 0.0
        %1711 = vmatpush1.msra.mxu0 0.0
        %1712 = vmatprep.subr.mxu0 0.0
        %1713 = vmatpush1.msra.mxu0 0.0
        %1714 = vmatprep.subr.mxu0 0.0
        %1715 = vmatpush1.msra.mxu0 0.0
        %1716 = vmatprep.subr.mxu0 0.0
        %1717 = vmatpush1.msra.mxu0 0.0
        %1718 = vmatprep.subr.mxu0 0.0
        %1719 = vmatpush1.msra.mxu0 0.0
        %1720 = vmatprep.subr.mxu0 0.0
        %1721 = vmatpush1.msra.mxu0 0.0
        %1722 = vmatprep.subr.mxu0 0.0
        %1723 = vmatpush1.msra.mxu0 0.0
        %1724 = vmatprep.subr.mxu0 0.0
        %1725 = vmatpush1.msra.mxu0 0.0
        %1726 = vmatprep.subr.mxu0 0.0
        %1727 = vmatpush1.msra.mxu0 0.0
        %1728 = vmatprep.subr.mxu0 0.0
        %1729 = vmatpush1.msra.mxu0 0.0
        %1730 = vmatprep.subr.mxu0 0.0
        %1731 = vmatpush1.msra.mxu0 0.0
        %1732 = vmatprep.subr.mxu0 0.0
        %1733 = vmatpush1.msra.mxu0 0.0
        %1734 = vmatprep.subr.mxu0 0.0
        %1735 = vmatpush1.msra.mxu0 0.0
        %1736 = vmatprep.subr.mxu0 0.0
        %1737 = vmatpush1.msra.mxu0 0.0
        %1738 = vmatprep.subr.mxu0 0.0
        %1739 = vmatpush1.msra.mxu0 0.0
        %1740 = vmatprep.subr.mxu0 0.0
        %1741 = vmatpush1.msra.mxu0 0.0
        %1742 = vmatprep.subr.mxu0 0.0
        %1743 = vmatpush1.msra.mxu0 0.0
        %1744 = vmatprep.subr.mxu0 0.0
        %1745 = vmatpush1.msra.mxu0 0.0
        %1746 = vmatprep.subr.mxu0 0.0
        %1747 = vmatpush1.msra.mxu0 0.0
        %1748 = vmatprep.mubr.f32.mxu0 0.0
        %1749 = vmatmul.mubr.f32.gmra.mrb[0].mxu0 %v1682
        %v1750 = vpop.f32.mrb[0].mxu0
        %v1751 = vadd.f32 0.0, %v1750
        %v1752 = vpop.f32.mrb[0].mxu0
        %1753 = vdwg.mxu0
        %v1754 = vadd.f32 %v1266, %v1751
        %1755 = vst.msk [vmem:[%s385] sm:$0xff] %vm437, %v1754
        %vm1756 = vcmask 57344
        %1757 = vst.msk [vmem:[%s399] sm:$0x1] %vm1756, %v776
        %1758 = vst.msk [vmem:[%s399 + $0x1] sm:$0x1] %vm1756, %v1158
        %1759 = vst.msk [vmem:[%s399 + $0x2] sm:$0x1] %vm1756, %v1648
        %s1760 = sand.u32 %s256, 1
        %s1761 = scalar_lea.sflag [#allocation6], %s1760
        %s1762 = sand.u32 %s256, 1
        %s1763 = smul.addr %s1762, 8
        %s1764 = scalar_lea.vmem [#allocation5], %s1763
        %p1765 = scmp.lt.s32.totalorder %s33, 1
        %s1766 = scalar_select %p1765, %s33, 1
        %s1767 = smul.addr %s1766, 4
        %s1768 = scalar_lea.vmem %s12, %s1767
        // Predicated region
        $region61: #{tpu_custom_call.1} parent=59 // pred_check
          %p1769 = pneg %p266
        $region62: #{tpu_custom_call.1} parent=59 // pred_check_branch
          %1771 = sbr.rel (%p1769) target = $region64
        $region63: #{tpu_custom_call.1} parent=59 // pred_region
          %s1773 = ssub.s32 128, 128
          %1774 = vsyncadd %s1761, %s1773
          %s1775 = smul.addr %s33, 128
          %s1776 = scalar_lea.hbm %s11, %s1775
          %s1778 = sshll.u32 %s1764, 4
          %s1779 = int_to_ptr.vmem [resolvable:$true] %s1778
          %1781 = dma.vmem_to_hbm [thread:$0]  %s1779, 128, %s1776, %s1761
        $region64: #{tpu_custom_call.1} parent=59 // pred_fallthru
          _
        // Predicated region
        $region65: #{tpu_custom_call.1} parent=59 // pred_check
          %p1782 = pneg %p292
        $region66: #{tpu_custom_call.1} parent=59 // pred_check_branch
          %1784 = sbr.rel (%p1782) target = $region68
        $region67: #{tpu_custom_call.1} parent=59 // pred_region
          _
        $region68: #{tpu_custom_call.1} parent=59 // pred_fallthru
          _
      $region60: #{tpu_custom_call.1} parent=5 // pred_fallthru
        _
      %p1785 = scmp.le.s32.totalorder 2, %s28
      // Predicated region
      $region69: #{tpu_custom_call.1} parent=5 // pred_check
        %p1786 = pneg %p1785
      $region70: #{tpu_custom_call.1} parent=5 // pred_check_branch
        %1788 = sbr.rel (%p1786) target = $region72
      $region71: #{tpu_custom_call.1} parent=5 // pred_region
        %s1789 = ssub.s32 %s28, 2
        // Predicated region
        $region73: #{tpu_custom_call.1} parent=71 // pred_check
          %p1790 = pneg %p272
        $region74: #{tpu_custom_call.1} parent=71 // pred_check_branch
          %1792 = sbr.rel (%p1790) target = $region76
        $region75: #{tpu_custom_call.1} parent=71 // pred_region
          %s1793 = sand.u32 %s257, 1
          %s1794 = scalar_lea.sflag [#allocation6], %s1793
          %s1795 = sand.u32 %s257, 1
          %s1796 = smul.addr %s1795, 8
          %s1797 = scalar_lea.vmem [#allocation5], %s1796
          %1798 = dma.done %s1794, 128
        $region76: #{tpu_custom_call.1} parent=71 // pred_fallthru
          _
        // Predicated region
        $region77: #{tpu_custom_call.1} parent=71 // pred_check
          %p1799 = pneg %p298
        $region78: #{tpu_custom_call.1} parent=71 // pred_check_branch
          %1801 = sbr.rel (%p1799) target = $region80
        $region79: #{tpu_custom_call.1} parent=71 // pred_region
          %p1802 = scmp.lt.s32.totalorder %s34, 1
          %s1803 = scalar_select %p1802, %s34, 1
          %s1804 = smul.addr %s1803, 4
          %s1805 = scalar_lea.vmem %s12, %s1804
        $region80: #{tpu_custom_call.1} parent=71 // pred_fallthru
          _
      $region72: #{tpu_custom_call.1} parent=5 // pred_fallthru
        _
    $region6: #{tpu_custom_call.1} parent=1 // loop_footer
      %s32 = sadd.s32 1, %s28
    $region7: #{tpu_custom_call.1} parent=1 // loop_footer_branch
      %27 = sbr.rel target = $region3
    $region8: #{tpu_custom_call.1} parent=1 // loop_exit
      _
    %1806 = vsyncpa [#allocation6], 1
    %s1807 = scalar_lea.sflag [#allocation6], 1
    %1808 = vsyncpa %s1807, 1

</llo_original>
